<compile_context>
chip_gen: v6e
topology: v6e:2x2x1
jax: 0.10.0
libtpu: 0.0.40
codegen_flags: <defaults>
</compile_context>

<pallas_src>
import jax
import jax.numpy as jnp
from jax import lax
from jax.experimental import pallas as pl
from jax.experimental.pallas import tpu as pltpu

# ------------------------- model hyper-parameters ---------------------------
VOCAB = 256          # small stand-in for tokenizer.n_vocab (lane-dense: 2*128)
EMBED_DIM = 32
NUM_HEADS = 4
HEAD_DIM = EMBED_DIM // NUM_HEADS
NUM_LAYERS = 2
MAX_SEQ_LEN = 8
BATCH = 2
SEQ_LEN = 8          # == MAX_SEQ_LEN (full causal window)
DROPOUT_PROB = 0.1   # identity at inference; kept only for parity with module
LN_EPS = 1e-5        # PyTorch nn.LayerNorm default

BT = BATCH * SEQ_LEN          # 16 : all tokens (batch-major) = row dim of every matmul
HT = NUM_HEADS * BT           # 64 : widened attention axis, column c = h*BT + b*T + s


# ------------------------------- kernel -------------------------------------
def stack_kernel(x0_ref, head_sel_ref, amask_ref, lmw_ref, lmb_ref,
                 wqkv_ref, wo_ref, w1_ref, w2_ref, misc_ref,
                 logits_ref, x_sc):
    """Grid step i == transformer block i.  Residual stream stays resident in
    x_sc across steps; final LayerNorm + lm_head run on the last step."""
    E, H4 = EMBED_DIM, 4 * EMBED_DIM
    layer = pl.program_id(0)

    @pl.when(layer == 0)
    def _():
        x_sc[...] = x0_ref[...].astype(jnp.float32)

    x = x_sc[...]                                    # (BT, E) residual stream
    head_sel = head_sel_ref[...]                     # (HT, E) own-head dim selector
    amask = amask_ref[...]                           # (BT, HT) additive causal/batch mask
    misc = misc_ref[...]                             # packed per-layer small params
    bqkv = misc[0:1, :3 * E]                         # LN1-beta folded qkv bias (q part pre-scaled)
    bo   = misc[1:2, :E]                             # output projection bias
    b1   = misc[2:3, :H4]                            # LN2-beta folded FFN bias 1
    b2   = misc[3:4, :E]                             # FFN bias 2

    # ---- LayerNorm 1 (gamma/beta folded into wqkv/bqkv at prep time) -------
    mu1 = jnp.mean(x, axis=-1, keepdims=True)
    var1 = jnp.mean((x - mu1) ** 2, axis=-1, keepdims=True)
    xn1 = (x - mu1) * lax.rsqrt(var1 + LN_EPS)

    # ---- fused QKV projection (attention scale pre-folded into Q columns) --
    qkv = jnp.dot(xn1, wqkv_ref[...], preferred_element_type=jnp.float32) + bqkv
    q = qkv[:, :E]
    k = qkv[:, E:2 * E]
    v = qkv[:, 2 * E:]

    # ---- block-diagonal-over-heads attention --------------------------------
    # Widened column c = h*BT + b*T + s; head_sel keeps only head h's dims of k/v.
    kb = jnp.concatenate([k] * NUM_HEADS, axis=0) * head_sel   # (HT, E)
    vb = jnp.concatenate([v] * NUM_HEADS, axis=0) * head_sel   # (HT, E)

    s = jnp.einsum("te,ce->tc", q, kb,
                   preferred_element_type=jnp.float32) + amask  # (BT, HT)
    m = jnp.max(s, axis=-1, keepdims=True)                      # finite (diag always valid)
    p = jnp.exp(s - m)                                          # masked columns -> exactly 0

    # Post-normalized context: two back-to-back MXU ops reusing head_sel.
    # denom_e[t, e] equals the softmax group sum for (head(e), batch(t)) because
    # wrong-batch / non-causal columns of p are already zero.
    ctx_un  = jnp.dot(p, vb, preferred_element_type=jnp.float32)        # (BT, E)
    denom_e = jnp.dot(p, head_sel, preferred_element_type=jnp.float32)  # (BT, E)
    ctx = ctx_un * pl.reciprocal(jnp.maximum(denom_e, 1e-30))           # exact reciprocal

    attn = jnp.dot(ctx, wo_ref[...], preferred_element_type=jnp.float32) + bo
    res1 = x + attn                                  # attention dropout: identity (eval)

    # ---- LayerNorm 2 (affine folded into w1/b1) + FeedForward ---------------
    mu2 = jnp.mean(res1, axis=-1, keepdims=True)
    var2 = jnp.mean((res1 - mu2) ** 2, axis=-1, keepdims=True)
    xn2 = (res1 - mu2) * lax.rsqrt(var2 + LN_EPS)

    h1 = jnp.maximum(
        jnp.dot(xn2, w1_ref[...], preferred_element_type=jnp.float32) + b1, 0.0)
    ff = jnp.dot(h1, w2_ref[...], preferred_element_type=jnp.float32) + b2
    x_new = res1 + ff                                # FFN dropout: identity (eval)
    x_sc[...] = x_new

    # ---- final LayerNorm + lm_head on the last layer -------------------------
    @pl.when(layer == pl.num_programs(0) - 1)
    def _():
        muf = jnp.mean(x_new, axis=-1, keepdims=True)
        varf = jnp.mean((x_new - muf) ** 2, axis=-1, keepdims=True)
        xnf = (x_new - muf) * lax.rsqrt(varf + LN_EPS)
        logits_ref[...] = (
            jnp.dot(xnf, lmw_ref[...], preferred_element_type=jnp.float32)
            + lmb_ref[...]).astype(logits_ref.dtype)


# --------------------------- one-time param prep ------------------------------
def prepare_params(raw):
    """Done ONCE, outside the per-token forward (review: hoist packing/folding).
    Fuses QKV, folds LN affines / attention scale into weights, packs small
    vectors into one (8,128) tile per layer, precomputes the constant masks."""
    tok_emb, pos_emb, layers, gf, bef, lm_w, lm_b = raw
    E, H4 = EMBED_DIM, 4 * EMBED_DIM
    scale = jnp.float32(HEAD_DIM) ** -0.5

    wqkv_l, wo_l, w1_l, w2_l, misc_l = [], [], [], [], []
    for (wq, wk, wv, wo, bo, w1, b1, w2, b2, g1, be1, g2, be2) in layers:
        wqkv_raw = jnp.concatenate([wq, wk, wv], axis=1)      # (E, 3E)
        bqkv = be1 @ wqkv_raw                                  # LN1 beta folded (no orig qkv bias)
        wqkv = g1[:, None] * wqkv_raw                          # LN1 gamma folded
        wqkv = wqkv.at[:, :E].multiply(scale)                  # attention scale into Q columns
        bqkv = bqkv.at[:E].multiply(scale)

        w1f = g2[:, None] * w1                                 # LN2 gamma folded
        b1f = be2 @ w1 + b1                                    # LN2 beta folded

        misc = jnp.zeros((8, 128), jnp.float32)
        misc = misc.at[0, :3 * E].set(bqkv)
        misc = misc.at[1, :E].set(bo)
        misc = misc.at[2, :H4].set(b1f)
        misc = misc.at[3, :E].set(b2)

        wqkv_l.append(wqkv); wo_l.append(wo); w1_l.append(w1f)
        w2_l.append(w2); misc_l.append(misc)

    lm_wf = gf[:, None] * lm_w                                 # final-LN gamma folded
    lm_bf = (bef @ lm_w + lm_b)[None, :]                       # final-LN beta folded, (1, V)

    # constant masks (XLA constants, DMA'd once; no in-kernel iota chain)
    rr = lax.broadcasted_iota(jnp.int32, (HT, E), 0)
    cc = lax.broadcasted_iota(jnp.int32, (HT, E), 1)
    head_sel = (rr // BT == cc // HEAD_DIM).astype(jnp.float32)

    tr = lax.broadcasted_iota(jnp.int32, (BT, HT), 0)          # query row  = b_q*T + t
    tc = lax.broadcasted_iota(jnp.int32, (BT, HT), 1)          # key column = h*BT + b_k*T + s
    same_batch = (tr // SEQ_LEN) == ((tc % BT) // SEQ_LEN)
    causal = (tc % SEQ_LEN) <= (tr % SEQ_LEN)
    amask = jnp.where(jnp.logical_and(same_batch, causal), 0.0, -1e30).astype(jnp.float32)

    return dict(
        tok_emb=tok_emb, pos_emb=pos_emb,
        wqkv=jnp.stack(wqkv_l), wo=jnp.stack(wo_l), w1=jnp.stack(w1_l),
        w2=jnp.stack(w2_l), misc=jnp.stack(misc_l),
        lm_w=lm_wf, lm_b=lm_bf, head_sel=head_sel, amask=amask)


# ------------------------------ forward wrapper -------------------------------
@jax.jit
def transformer_forward(idx, packed):
    """TransformerModel.forward (targets=None path): embeddings -> L blocks ->
    final LayerNorm -> lm_head logits."""
    B, T = idx.shape
    E, V, L = EMBED_DIM, VOCAB, NUM_LAYERS

    # TODO(synk): token/position embedding gather is left to XLA (data-dependent
    # row gather; at 16 tokens a Pallas gather kernel would be pure overhead).
    x = jnp.take(packed["tok_emb"], idx, axis=0) + packed["pos_emb"][None, :T, :]
    x2 = x.reshape(B * T, E).astype(jnp.float32)

    const = lambda shape: pl.BlockSpec(shape, lambda i, _s=None: (0,) * len(shape))
    per_layer = lambda d1, d2: pl.BlockSpec((None, d1, d2), lambda i: (i, 0, 0))

    logits = pl.pallas_call(
        stack_kernel,
        out_shape=jax.ShapeDtypeStruct((B * T, V), jnp.float32),
        grid_spec=pltpu.PrefetchScalarGridSpec(
            num_scalar_prefetch=0,
            grid=(L,),                       # one step per transformer block
            in_specs=[
                const((B * T, E)),           # x0 (embedded tokens)        - DMA'd once
                const((HT, E)),              # head_sel mask               - DMA'd once
                const((B * T, HT)),          # additive causal/batch mask  - DMA'd once
                const((E, V)),               # lm_head weight (final LN folded)
                const((1, V)),               # lm_head bias  (final LN folded)
                per_layer(E, 3 * E),         # fused Wqkv   (LN1 + scale folded)
                per_layer(E, E),             # Wo
                per_layer(E, 4 * E),         # FF W1        (LN2 folded)
                per_layer(4 * E, E),         # FF W2
                per_layer(8, 128),           # packed per-layer biases
            ],
            out_specs=const((B * T, V)),     # lane-dense logits (V multiple of 128)
            scratch_shapes=[pltpu.VMEM((B * T, E), jnp.float32)],   # residual stream
        ),
        compiler_params=pltpu.CompilerParams(
            dimension_semantics=("arbitrary",)),   # layers are sequential
    )(x2, packed["head_sel"], packed["amask"], packed["lm_w"], packed["lm_b"],
      packed["wqkv"], packed["wo"], packed["w1"], packed["w2"], packed["misc"])

    return logits.reshape(B, T, V)


# ----------------------- pure-JAX reference (for check) ----------------------
def reference_forward(idx, raw):
    tok_emb, pos_emb, layers, gf, bef, lm_w, lm_b = raw
    B, T = idx.shape
    x = tok_emb[idx] + pos_emb[None, :T, :]

    def ln(t, g, b):
        mu = jnp.mean(t, -1, keepdims=True)
        var = jnp.mean((t - mu) ** 2, -1, keepdims=True)
        return (t - mu) / jnp.sqrt(var + LN_EPS) * g + b

    for (wq, wk, wv, wo, bo, w1, b1, w2, b2, g1, be1, g2, be2) in layers:
        xn1 = ln(x, g1, be1)
        q = xn1 @ wq
        k = xn1 @ wk
        v = xn1 @ wv
        qh = q.reshape(B, T, NUM_HEADS, HEAD_DIM).transpose(0, 2, 1, 3)
        kh = k.reshape(B, T, NUM_HEADS, HEAD_DIM).transpose(0, 2, 1, 3)
        vh = v.reshape(B, T, NUM_HEADS, HEAD_DIM).transpose(0, 2, 1, 3)
        s = jnp.einsum("bhqd,bhkd->bhqk", qh, kh) * HEAD_DIM ** -0.5
        mask = jnp.tril(jnp.ones((T, T), bool))
        s = jnp.where(mask, s, -jnp.inf)
        p = jax.nn.softmax(s, axis=-1)
        o = jnp.einsum("bhqk,bhkd->bhqd", p, vh).transpose(0, 2, 1, 3).reshape(B, T, -1)
        attn = o @ wo + bo
        res1 = x + attn
        xn2 = ln(res1, g2, be2)
        ff = jnp.maximum(xn2 @ w1 + b1, 0.0) @ w2 + b2
        x = res1 + ff

    x = ln(x, gf, bef)
    return x @ lm_w + lm_b


# -------------------------------- main ---------------------------------------
if __name__ == "__main__":
    key = jax.random.PRNGKey(0)
    E, H4, V = EMBED_DIM, 4 * EMBED_DIM, VOCAB
    sc = 0.1

    k_idx, k_tok, k_pos, k_lmw, k_lmb, k_layers = jax.random.split(key, 6)
    idx = jax.random.randint(k_idx, (BATCH, SEQ_LEN), 0, V, dtype=jnp.int32)

    layers = []
    lkeys = jax.random.split(k_layers, NUM_LAYERS)
    for lk in lkeys:
        ks = jax.random.split(lk, 9)
        layers.append((
            sc * jax.random.normal(ks[0], (E, E), jnp.float32),    # Wq (heads packed)
            sc * jax.random.normal(ks[1], (E, E), jnp.float32),    # Wk
            sc * jax.random.normal(ks[2], (E, E), jnp.float32),    # Wv
            sc * jax.random.normal(ks[3], (E, E), jnp.float32),    # Wo (output proj)
            sc * jax.random.normal(ks[4], (E,), jnp.float32),      # bo
            sc * jax.random.normal(ks[5], (E, H4), jnp.float32),   # FF W1
            sc * jax.random.normal(ks[6], (H4,), jnp.float32),     # FF b1
            sc * jax.random.normal(ks[7], (H4, E), jnp.float32),   # FF W2
            sc * jax.random.normal(ks[8], (E,), jnp.float32),      # FF b2
            jnp.ones((E,), jnp.float32),                           # LN1 gamma
            jnp.zeros((E,), jnp.float32),                          # LN1 beta
            jnp.ones((E,), jnp.float32),                           # LN2 gamma
            jnp.zeros((E,), jnp.float32),                          # LN2 beta
        ))

    raw = (
        sc * jax.random.normal(k_tok, (V, E), jnp.float32),        # token embedding
        sc * jax.random.normal(k_pos, (MAX_SEQ_LEN, E), jnp.float32),  # position embedding
        tuple(layers),
        jnp.ones((E,), jnp.float32),                               # final LN gamma
        jnp.zeros((E,), jnp.float32),                              # final LN beta
        sc * jax.random.normal(k_lmw, (E, V), jnp.float32),        # lm_head weight
        sc * jax.random.normal(k_lmb, (V,), jnp.float32),          # lm_head bias
    )

    packed = prepare_params(raw)   # one-time prep (not part of the per-call forward)

    logits = jax.block_until_ready(transformer_forward(idx, packed))
    ref = reference_forward(idx, raw)

    assert logits.shape == (BATCH, SEQ_LEN, V)
    assert jnp.allclose(logits, ref, atol=1e-4, rtol=1e-4), "mismatch vs reference"

    print("KERNEL_OK")
</pallas_src>

<mosaic_0001>
module attributes {stable_mosaic.version = 11 : i64} {
  func.func @stack_kernel(%arg0: i32, %arg1: memref<16x32xf32, #tpu.memory_space<vmem>>, %arg2: memref<64x32xf32, #tpu.memory_space<vmem>>, %arg3: memref<16x64xf32, #tpu.memory_space<vmem>>, %arg4: memref<32x256xf32, #tpu.memory_space<vmem>>, %arg5: memref<1x256xf32, #tpu.memory_space<vmem>>, %arg6: memref<1x32x96xf32, #tpu.memory_space<vmem>>, %arg7: memref<1x32x32xf32, #tpu.memory_space<vmem>>, %arg8: memref<1x32x128xf32, #tpu.memory_space<vmem>>, %arg9: memref<1x128x32xf32, #tpu.memory_space<vmem>>, %arg10: memref<1x8x128xf32, #tpu.memory_space<vmem>>, %arg11: memref<16x256xf32, #tpu.memory_space<vmem>>, %arg12: memref<16x32xf32, #tpu.memory_space<vmem>>) attributes {dimension_semantics = [#tpu.dimension_semantics<arbitrary>], iteration_bounds = array<i64: 2>, scalar_prefetch = 0 : i64, scratch_operands = 1 : i64, tpu.core_type = #tpu.core_type<tc>, window_params = [{pipeline_mode = #tpu.pipeline_mode<synchronous>, transform_indices = @transform_0, window_bounds = array<i64: 16, 32>}, {pipeline_mode = #tpu.pipeline_mode<synchronous>, transform_indices = @transform_1, window_bounds = array<i64: 64, 32>}, {pipeline_mode = #tpu.pipeline_mode<synchronous>, transform_indices = @transform_2, window_bounds = array<i64: 16, 64>}, {pipeline_mode = #tpu.pipeline_mode<synchronous>, transform_indices = @transform_3, window_bounds = array<i64: 32, 256>}, {pipeline_mode = #tpu.pipeline_mode<synchronous>, transform_indices = @transform_4, window_bounds = array<i64: 1, 256>}, {transform_indices = @transform_5, window_bounds = array<i64: 1, 32, 96>}, {transform_indices = @transform_6, window_bounds = array<i64: 1, 32, 32>}, {transform_indices = @transform_7, window_bounds = array<i64: 1, 32, 128>}, {transform_indices = @transform_8, window_bounds = array<i64: 1, 128, 32>}, {transform_indices = @transform_9, window_bounds = array<i64: 1, 8, 128>}, {pipeline_mode = #tpu.pipeline_mode<synchronous>, transform_indices = @transform_10, window_bounds = array<i64: 16, 256>}]} {
    %c0_i32 = arith.constant 0 : i32
    %0 = arith.cmpi eq, %arg0, %c0_i32 : i32
    %1 = arith.extui %0 : i1 to i32
    %c0_i32_0 = arith.constant 0 : i32
    %2 = arith.cmpi ne, %1, %c0_i32_0 : i32
    scf.if %2 {
      %c0_43 = arith.constant 0 : index
      %c0_44 = arith.constant 0 : index
      %96 = vector.load %arg1[%c0_43, %c0_44] : memref<16x32xf32, #tpu.memory_space<vmem>>, vector<16x32xf32>
      %c0_45 = arith.constant 0 : index
      %c0_46 = arith.constant 0 : index
      %97 = vector.load %arg12[%c0_45, %c0_46] : memref<16x32xf32, #tpu.memory_space<vmem>>, vector<16x32xf32>
      tpu.vector_store %arg12[%c0_45, %c0_46], %96 {strides = array<i32>} : memref<16x32xf32, #tpu.memory_space<vmem>>, vector<16x32xf32>,
    } else {
    }
    %c0 = arith.constant 0 : index
    %c0_1 = arith.constant 0 : index
    %3 = vector.load %arg12[%c0, %c0_1] : memref<16x32xf32, #tpu.memory_space<vmem>>, vector<16x32xf32>
    %c0_2 = arith.constant 0 : index
    %c0_3 = arith.constant 0 : index
    %4 = vector.load %arg2[%c0_2, %c0_3] : memref<64x32xf32, #tpu.memory_space<vmem>>, vector<64x32xf32>
    %c0_4 = arith.constant 0 : index
    %c0_5 = arith.constant 0 : index
    %5 = vector.load %arg3[%c0_4, %c0_5] : memref<16x64xf32, #tpu.memory_space<vmem>>, vector<16x64xf32>
    %c0_6 = arith.constant 0 : index
    %c0_7 = arith.constant 0 : index
    %c0_8 = arith.constant 0 : index
    %6 = vector.load %arg10[%c0_6, %c0_7, %c0_8] : memref<1x8x128xf32, #tpu.memory_space<vmem>>, vector<1x8x128xf32>
    %7 = vector.shape_cast %6 : vector<1x8x128xf32> to vector<8x128xf32>
    %8 = vector.extract_strided_slice %7 {offsets = [0, 0], sizes = [1, 96], strides = [1, 1]} : vector<8x128xf32> to vector<1x96xf32>
    %9 = vector.extract_strided_slice %7 {offsets = [1, 0], sizes = [1, 32], strides = [1, 1]} : vector<8x128xf32> to vector<1x32xf32>
    %10 = vector.extract_strided_slice %7 {offsets = [2, 0], sizes = [1, 128], strides = [1, 1]} : vector<8x128xf32> to vector<1x128xf32>
    %11 = vector.extract_strided_slice %7 {offsets = [3, 0], sizes = [1, 32], strides = [1, 1]} : vector<8x128xf32> to vector<1x32xf32>
    %cst = arith.constant dense<0.000000e+00> : vector<16xf32>
    %12 = vector.multi_reduction <add>, %3, %cst [1] : vector<16x32xf32> to vector<16xf32>
    %13 = vector.shape_cast %12 : vector<16xf32> to vector<16x1xf32>
    %cst_9 = arith.constant 3.200000e+01 : f32
    %14 = vector.broadcast %cst_9 : f32 to vector<16x1xf32>
    %15 = arith.divf %13, %14 : vector<16x1xf32>
    %16 = vector.broadcast %15 : vector<16x1xf32> to vector<16x32xf32>
    %17 = arith.subf %3, %16 : vector<16x32xf32>
    %18 = arith.mulf %17, %17 : vector<16x32xf32>
    %cst_10 = arith.constant dense<0.000000e+00> : vector<16xf32>
    %19 = vector.multi_reduction <add>, %18, %cst_10 [1] : vector<16x32xf32> to vector<16xf32>
    %20 = vector.shape_cast %19 : vector<16xf32> to vector<16x1xf32>
    %cst_11 = arith.constant 3.200000e+01 : f32
    %21 = vector.broadcast %cst_11 : f32 to vector<16x1xf32>
    %22 = arith.divf %20, %21 : vector<16x1xf32>
    %23 = vector.broadcast %15 : vector<16x1xf32> to vector<16x32xf32>
    %24 = arith.subf %3, %23 : vector<16x32xf32>
    %cst_12 = arith.constant 9.99999974E-6 : f32
    %25 = vector.broadcast %cst_12 : f32 to vector<16x1xf32>
    %26 = arith.addf %22, %25 : vector<16x1xf32>
    %27 = math.rsqrt %26 : vector<16x1xf32>
    %28 = vector.broadcast %27 : vector<16x1xf32> to vector<16x32xf32>
    %29 = arith.mulf %24, %28 : vector<16x32xf32>
    %c0_13 = arith.constant 0 : index
    %c0_14 = arith.constant 0 : index
    %c0_15 = arith.constant 0 : index
    %30 = vector.load %arg6[%c0_13, %c0_14, %c0_15] : memref<1x32x96xf32, #tpu.memory_space<vmem>>, vector<1x32x96xf32>
    %31 = vector.shape_cast %30 : vector<1x32x96xf32> to vector<32x96xf32>
    %cst_16 = arith.constant dense<0.000000e+00> : vector<16x96xf32>
    %32 = tpu.matmul %29, %31, %cst_16 {dimension_numbers = #tpu.dot_dimension_numbers<[1], [0], [0], [1], [0, 0, 1, 1], [], []>} : vector<16x32xf32>, vector<32x96xf32>, vector<16x96xf32> -> vector<16x96xf32>
    %33 = vector.broadcast %8 : vector<1x96xf32> to vector<16x96xf32>
    %34 = arith.addf %32, %33 : vector<16x96xf32>
    %35 = vector.extract_strided_slice %34 {offsets = [0, 0], sizes = [16, 32], strides = [1, 1]} : vector<16x96xf32> to vector<16x32xf32>
    %36 = vector.extract_strided_slice %34 {offsets = [0, 32], sizes = [16, 32], strides = [1, 1]} : vector<16x96xf32> to vector<16x32xf32>
    %37 = vector.extract_strided_slice %34 {offsets = [0, 64], sizes = [16, 32], strides = [1, 1]} : vector<16x96xf32> to vector<16x32xf32>
    %38 = tpu.concatenate %36, %36, %36, %36 in 0 : vector<16x32xf32>, vector<16x32xf32>, vector<16x32xf32>, vector<16x32xf32> -> vector<64x32xf32>
    %39 = arith.mulf %38, %4 : vector<64x32xf32>
    %40 = tpu.concatenate %37, %37, %37, %37 in 0 : vector<16x32xf32>, vector<16x32xf32>, vector<16x32xf32>, vector<16x32xf32> -> vector<64x32xf32>
    %41 = arith.mulf %40, %4 : vector<64x32xf32>
    "tpu.trace_start"() <{level = 10 : i32, message = "te,ce->tc"}> : () -> ()
    %cst_17 = arith.constant dense<0.000000e+00> : vector<16x64xf32>
    %42 = tpu.matmul %35, %39, %cst_17 {dimension_numbers = #tpu.dot_dimension_numbers<[1], [1], [0], [0], [0, 0, 1, 0], [], []>} : vector<16x32xf32>, vector<64x32xf32>, vector<16x64xf32> -> vector<16x64xf32>
    "tpu.trace_stop"() : () -> ()
    %43 = arith.addf %42, %5 : vector<16x64xf32>
    %cst_18 = arith.constant dense<0xFF800000> : vector<16xf32>
    %44 = vector.multi_reduction <maximumf>, %43, %cst_18 [1] : vector<16x64xf32> to vector<16xf32>
    %45 = vector.shape_cast %44 : vector<16xf32> to vector<16x1xf32>
    %46 = vector.broadcast %45 : vector<16x1xf32> to vector<16x64xf32>
    %47 = arith.subf %43, %46 : vector<16x64xf32>
    %48 = math.exp %47 : vector<16x64xf32>
    %cst_19 = arith.constant dense<0.000000e+00> : vector<16x32xf32>
    %49 = tpu.matmul %48, %41, %cst_19 {dimension_numbers = #tpu.dot_dimension_numbers<[1], [0], [0], [1], [0, 0, 1, 1], [], []>} : vector<16x64xf32>, vector<64x32xf32>, vector<16x32xf32> -> vector<16x32xf32>
    %cst_20 = arith.constant dense<0.000000e+00> : vector<16x32xf32>
    %50 = tpu.matmul %48, %4, %cst_20 {dimension_numbers = #tpu.dot_dimension_numbers<[1], [0], [0], [1], [0, 0, 1, 1], [], []>} : vector<16x64xf32>, vector<64x32xf32>, vector<16x32xf32> -> vector<16x32xf32>
    %cst_21 = arith.constant 1.000000e-30 : f32
    %51 = vector.broadcast %cst_21 : f32 to vector<16x32xf32>
    %52 = arith.maximumf %50, %51 : vector<16x32xf32>
    %53 = tpu.reciprocal %52 : vector<16x32xf32> -> vector<16x32xf32>
    %54 = arith.mulf %49, %53 : vector<16x32xf32>
    %c0_22 = arith.constant 0 : index
    %c0_23 = arith.constant 0 : index
    %c0_24 = arith.constant 0 : index
    %55 = vector.load %arg7[%c0_22, %c0_23, %c0_24] : memref<1x32x32xf32, #tpu.memory_space<vmem>>, vector<1x32x32xf32>
    %56 = vector.shape_cast %55 : vector<1x32x32xf32> to vector<32x32xf32>
    %cst_25 = arith.constant dense<0.000000e+00> : vector<16x32xf32>
    %57 = tpu.matmul %54, %56, %cst_25 {dimension_numbers = #tpu.dot_dimension_numbers<[1], [0], [0], [1], [0, 0, 1, 1], [], []>} : vector<16x32xf32>, vector<32x32xf32>, vector<16x32xf32> -> vector<16x32xf32>
    %58 = vector.broadcast %9 : vector<1x32xf32> to vector<16x32xf32>
    %59 = arith.addf %57, %58 : vector<16x32xf32>
    %60 = arith.addf %3, %59 : vector<16x32xf32>
    %cst_26 = arith.constant dense<0.000000e+00> : vector<16xf32>
    %61 = vector.multi_reduction <add>, %60, %cst_26 [1] : vector<16x32xf32> to vector<16xf32>
    %62 = vector.shape_cast %61 : vector<16xf32> to vector<16x1xf32>
    %cst_27 = arith.constant 3.200000e+01 : f32
    %63 = vector.broadcast %cst_27 : f32 to vector<16x1xf32>
    %64 = arith.divf %62, %63 : vector<16x1xf32>
    %65 = vector.broadcast %64 : vector<16x1xf32> to vector<16x32xf32>
    %66 = arith.subf %60, %65 : vector<16x32xf32>
    %67 = arith.mulf %66, %66 : vector<16x32xf32>
    %cst_28 = arith.constant dense<0.000000e+00> : vector<16xf32>
    %68 = vector.multi_reduction <add>, %67, %cst_28 [1] : vector<16x32xf32> to vector<16xf32>
    %69 = vector.shape_cast %68 : vector<16xf32> to vector<16x1xf32>
    %cst_29 = arith.constant 3.200000e+01 : f32
    %70 = vector.broadcast %cst_29 : f32 to vector<16x1xf32>
    %71 = arith.divf %69, %70 : vector<16x1xf32>
    %72 = vector.broadcast %64 : vector<16x1xf32> to vector<16x32xf32>
    %73 = arith.subf %60, %72 : vector<16x32xf32>
    %cst_30 = arith.constant 9.99999974E-6 : f32
    %74 = vector.broadcast %cst_30 : f32 to vector<16x1xf32>
    %75 = arith.addf %71, %74 : vector<16x1xf32>
    %76 = math.rsqrt %75 : vector<16x1xf32>
    %77 = vector.broadcast %76 : vector<16x1xf32> to vector<16x32xf32>
    %78 = arith.mulf %73, %77 : vector<16x32xf32>
    %c0_31 = arith.constant 0 : index
    %c0_32 = arith.constant 0 : index
    %c0_33 = arith.constant 0 : index
    %79 = vector.load %arg8[%c0_31, %c0_32, %c0_33] : memref<1x32x128xf32, #tpu.memory_space<vmem>>, vector<1x32x128xf32>
    %80 = vector.shape_cast %79 : vector<1x32x128xf32> to vector<32x128xf32>
    %cst_34 = arith.constant dense<0.000000e+00> : vector<16x128xf32>
    %81 = tpu.matmul %78, %80, %cst_34 {dimension_numbers = #tpu.dot_dimension_numbers<[1], [0], [0], [1], [0, 0, 1, 1], [], []>} : vector<16x32xf32>, vector<32x128xf32>, vector<16x128xf32> -> vector<16x128xf32>
    %82 = vector.broadcast %10 : vector<1x128xf32> to vector<16x128xf32>
    %83 = arith.addf %81, %82 : vector<16x128xf32>
    %cst_35 = arith.constant 0.000000e+00 : f32
    %84 = vector.broadcast %cst_35 : f32 to vector<16x128xf32>
    %85 = arith.maximumf %83, %84 : vector<16x128xf32>
    %c0_36 = arith.constant 0 : index
    %c0_37 = arith.constant 0 : index
    %c0_38 = arith.constant 0 : index
    %86 = vector.load %arg9[%c0_36, %c0_37, %c0_38] : memref<1x128x32xf32, #tpu.memory_space<vmem>>, vector<1x128x32xf32>
    %87 = vector.shape_cast %86 : vector<1x128x32xf32> to vector<128x32xf32>
    %cst_39 = arith.constant dense<0.000000e+00> : vector<16x32xf32>
    %88 = tpu.matmul %85, %87, %cst_39 {dimension_numbers = #tpu.dot_dimension_numbers<[1], [0], [0], [1], [0, 0, 1, 1], [], []>} : vector<16x128xf32>, vector<128x32xf32>, vector<16x32xf32> -> vector<16x32xf32>
    %89 = vector.broadcast %11 : vector<1x32xf32> to vector<16x32xf32>
    %90 = arith.addf %88, %89 : vector<16x32xf32>
    %91 = arith.addf %60, %90 : vector<16x32xf32>
    %c0_40 = arith.constant 0 : index
    %c0_41 = arith.constant 0 : index
    %92 = vector.load %arg12[%c0_40, %c0_41] : memref<16x32xf32, #tpu.memory_space<vmem>>, vector<16x32xf32>
    tpu.vector_store %arg12[%c0_40, %c0_41], %91 {strides = array<i32>} : memref<16x32xf32, #tpu.memory_space<vmem>>, vector<16x32xf32>,
    %c1_i32 = arith.constant 1 : i32
    %93 = arith.cmpi eq, %arg0, %c1_i32 : i32
    %94 = arith.extui %93 : i1 to i32
    %c0_i32_42 = arith.constant 0 : i32
    %95 = arith.cmpi ne, %94, %c0_i32_42 : i32
    scf.if %95 {
      %cst_43 = arith.constant dense<0.000000e+00> : vector<16xf32>
      %96 = vector.multi_reduction <add>, %91, %cst_43 [1] : vector<16x32xf32> to vector<16xf32>
      %97 = vector.shape_cast %96 : vector<16xf32> to vector<16x1xf32>
      %cst_44 = arith.constant 3.200000e+01 : f32
      %98 = vector.broadcast %cst_44 : f32 to vector<16x1xf32>
      %99 = arith.divf %97, %98 : vector<16x1xf32>
      %100 = vector.broadcast %99 : vector<16x1xf32> to vector<16x32xf32>
      %101 = arith.subf %91, %100 : vector<16x32xf32>
      %102 = arith.mulf %101, %101 : vector<16x32xf32>
      %cst_45 = arith.constant dense<0.000000e+00> : vector<16xf32>
      %103 = vector.multi_reduction <add>, %102, %cst_45 [1] : vector<16x32xf32> to vector<16xf32>
      %104 = vector.shape_cast %103 : vector<16xf32> to vector<16x1xf32>
      %cst_46 = arith.constant 3.200000e+01 : f32
      %105 = vector.broadcast %cst_46 : f32 to vector<16x1xf32>
      %106 = arith.divf %104, %105 : vector<16x1xf32>
      %107 = vector.broadcast %99 : vector<16x1xf32> to vector<16x32xf32>
      %108 = arith.subf %91, %107 : vector<16x32xf32>
      %cst_47 = arith.constant 9.99999974E-6 : f32
      %109 = vector.broadcast %cst_47 : f32 to vector<16x1xf32>
      %110 = arith.addf %106, %109 : vector<16x1xf32>
      %111 = math.rsqrt %110 : vector<16x1xf32>
      %112 = vector.broadcast %111 : vector<16x1xf32> to vector<16x32xf32>
      %113 = arith.mulf %108, %112 : vector<16x32xf32>
      %c0_48 = arith.constant 0 : index
      %c0_49 = arith.constant 0 : index
      %114 = vector.load %arg4[%c0_48, %c0_49] : memref<32x256xf32, #tpu.memory_space<vmem>>, vector<32x256xf32>
      %cst_50 = arith.constant dense<0.000000e+00> : vector<16x256xf32>
      %115 = tpu.matmul %113, %114, %cst_50 {dimension_numbers = #tpu.dot_dimension_numbers<[1], [0], [0], [1], [0, 0, 1, 1], [], []>} : vector<16x32xf32>, vector<32x256xf32>, vector<16x256xf32> -> vector<16x256xf32>
      %c0_51 = arith.constant 0 : index
      %c0_52 = arith.constant 0 : index
      %116 = vector.load %arg5[%c0_51, %c0_52] : memref<1x256xf32, #tpu.memory_space<vmem>>, vector<1x256xf32>
      %117 = vector.broadcast %116 : vector<1x256xf32> to vector<16x256xf32>
      %118 = arith.addf %115, %117 : vector<16x256xf32>
      %c0_53 = arith.constant 0 : index
      %c0_54 = arith.constant 0 : index
      %119 = vector.load %arg11[%c0_53, %c0_54] : memref<16x256xf32, #tpu.memory_space<vmem>>, vector<16x256xf32>
      tpu.vector_store %arg11[%c0_53, %c0_54], %118 {strides = array<i32>} : memref<16x256xf32, #tpu.memory_space<vmem>>, vector<16x256xf32>,
    } else {
    }
    return
  }
  func.func @transform_0(%arg0: i32) -> (i32, i32) {
    %c0_i32 = arith.constant 0 : i32
    %c0_i32_0 = arith.constant 0 : i32
    %c0_i32_1 = arith.constant 0 : i32
    return %c0_i32, %c0_i32_0 : i32, i32
  }
  func.func @transform_1(%arg0: i32) -> (i32, i32) {
    %c0_i32 = arith.constant 0 : i32
    %c0_i32_0 = arith.constant 0 : i32
    %c0_i32_1 = arith.constant 0 : i32
    return %c0_i32, %c0_i32_0 : i32, i32
  }
  func.func @transform_2(%arg0: i32) -> (i32, i32) {
    %c0_i32 = arith.constant 0 : i32
    %c0_i32_0 = arith.constant 0 : i32
    %c0_i32_1 = arith.constant 0 : i32
    return %c0_i32, %c0_i32_0 : i32, i32
  }
  func.func @transform_3(%arg0: i32) -> (i32, i32) {
    %c0_i32 = arith.constant 0 : i32
    %c0_i32_0 = arith.constant 0 : i32
    %c0_i32_1 = arith.constant 0 : i32
    return %c0_i32, %c0_i32_0 : i32, i32
  }
  func.func @transform_4(%arg0: i32) -> (i32, i32) {
    %c0_i32 = arith.constant 0 : i32
    %c0_i32_0 = arith.constant 0 : i32
    %c0_i32_1 = arith.constant 0 : i32
    return %c0_i32, %c0_i32_0 : i32, i32
  }
  func.func @transform_5(%arg0: i32) -> (i32, i32, i32) {
    %c0_i32 = arith.constant 0 : i32
    %c0_i32_0 = arith.constant 0 : i32
    %c0_i32_1 = arith.constant 0 : i32
    return %arg0, %c0_i32, %c0_i32_0 : i32, i32, i32
  }
  func.func @transform_6(%arg0: i32) -> (i32, i32, i32) {
    %c0_i32 = arith.constant 0 : i32
    %c0_i32_0 = arith.constant 0 : i32
    %c0_i32_1 = arith.constant 0 : i32
    return %arg0, %c0_i32, %c0_i32_0 : i32, i32, i32
  }
  func.func @transform_7(%arg0: i32) -> (i32, i32, i32) {
    %c0_i32 = arith.constant 0 : i32
    %c0_i32_0 = arith.constant 0 : i32
    %c0_i32_1 = arith.constant 0 : i32
    return %arg0, %c0_i32, %c0_i32_0 : i32, i32, i32
  }
  func.func @transform_8(%arg0: i32) -> (i32, i32, i32) {
    %c0_i32 = arith.constant 0 : i32
    %c0_i32_0 = arith.constant 0 : i32
    %c0_i32_1 = arith.constant 0 : i32
    return %arg0, %c0_i32, %c0_i32_0 : i32, i32, i32
  }
  func.func @transform_9(%arg0: i32) -> (i32, i32, i32) {
    %c0_i32 = arith.constant 0 : i32
    %c0_i32_0 = arith.constant 0 : i32
    %c0_i32_1 = arith.constant 0 : i32
    return %arg0, %c0_i32, %c0_i32_0 : i32, i32, i32
  }
  func.func @transform_10(%arg0: i32) -> (i32, i32) {
    %c0_i32 = arith.constant 0 : i32
    %c0_i32_0 = arith.constant 0 : i32
    %c0_i32_1 = arith.constant 0 : i32
    return %c0_i32, %c0_i32_0 : i32, i32
  }
}

</mosaic_0001>

<llo_original>
// kernel: transformer_forward.1
$region0: #{transformer_forward.1}
  #allocation0 [shape = 'u32[]', space=smem, size = 0x4, offset = 0x4, fixed_abs, tag = 'smem constant byte address 0x4 - core index']
  #allocation1 [shape = 'u32[144,128]{1,0:T(1,128)}', space=vmem, size = 0x12000, scoped, tag = 'internal scratch']
  #allocation2 [shape = 'f32[16,32]{1,0:T(8,128)}', space=vmem, size = 0x2000, scoped, tag = 'scratch operand']
  %s0 = inlined_call_operand.vmem [shape: f32[16,32], index: 0, kind: input, shape index: {}]
  %s1 = inlined_call_operand.vmem [shape: f32[64,32], index: 1, kind: input, shape index: {}]
  %s2 = inlined_call_operand.vmem [shape: f32[16,64], index: 2, kind: input, shape index: {}]
  %s3 = inlined_call_operand.vmem [shape: f32[32,256], index: 3, kind: input, shape index: {}]
  %s4 = inlined_call_operand.vmem [shape: f32[1,256], index: 4, kind: input, shape index: {}]
  %s5 = inlined_call_operand.vmem [shape: f32[2,32,96], index: 5, kind: input, shape index: {}]
  %s6 = inlined_call_operand.vmem [shape: f32[2,32,32], index: 6, kind: input, shape index: {}]
  %s7 = inlined_call_operand.vmem [shape: f32[2,32,128], index: 7, kind: input, shape index: {}]
  %s8 = inlined_call_operand.vmem [shape: f32[2,128,32], index: 8, kind: input, shape index: {}]
  %s9 = inlined_call_operand.vmem [shape: f32[2,8,128], index: 9, kind: input, shape index: {}]
  %s10 = inlined_call_operand.hbm [shape: f32[16,256], index: 10, kind: output, shape index: {}]
  %s11 = sld [smem:[#allocation0]]
  $region81: #{transformer_forward.1} parent=0
    _
  %s13 = ssub.s32 1, %s11
  %s14 = scalar_select 0, %s13, %s11
  $region1: #{transformer_forward.1} parent=0
    #allocation3 [shape = 'u8[16384]{0}', space=vmem, size = 0x4000, scoped, tag = 'output window, operand 0, single buffered']
    #allocation4 [shape = 's32[2]{0}', space=sflag, size = 0x8, scoped, tag = 'scoped memory for transformer_forward.1']
    %15 = vsyncpa [#allocation4], 0
    loop: start=0, step=1, limit=4
    $region2: #{transformer_forward.1} parent=1 // loop_pre_header
      _
    $region3: #{transformer_forward.1} parent=1 // loop_header
      %s17 = sphi 0, %s21
      %p18 = scmp.ge.s32.totalorder %s17, 4
      %s25 = sphi 0, %s25
      %s27 = sphi 0, %s25
      %s28 = sphi 0, %s27
      %s42 = sphi 0, %s28
      %s46 = sphi 0, %s46
      %s48 = sphi 0, %s46
      %s49 = sphi 0, %s48
      %s63 = sphi 0, %s49
      %s67 = sphi 0, %s67
      %s69 = sphi 0, %s67
      %s70 = sphi 0, %s69
      %s84 = sphi 0, %s70
      %s88 = sphi 0, %s88
      %s90 = sphi 0, %s88
      %s91 = sphi 0, %s90
      %s105 = sphi 0, %s91
      %s109 = sphi 0, %s109
      %s111 = sphi 0, %s109
      %s112 = sphi 0, %s111
      %s126 = sphi 0, %s112
      %s132 = sphi 0, %s134
      %s135 = sphi 0, %s132
      %s136 = sphi 0, %s135
      %s152 = sphi 0, %s136
      %s158 = sphi 0, %s160
      %s161 = sphi 0, %s158
      %s162 = sphi 0, %s161
      %s178 = sphi 0, %s162
      %s184 = sphi 0, %s186
      %s187 = sphi 0, %s184
      %s188 = sphi 0, %s187
      %s204 = sphi 0, %s188
      %s210 = sphi 0, %s212
      %s213 = sphi 0, %s210
      %s214 = sphi 0, %s213
      %s230 = sphi 0, %s214
      %s236 = sphi 0, %s238
      %s239 = sphi 0, %s236
      %s240 = sphi 0, %s239
      %s256 = sphi 0, %s240
      %s260 = sphi 0, %s260
      %s262 = sphi 0, %s260
      %s263 = sphi 0, %s262
      %s277 = sphi 0, %s263
    $region4: #{transformer_forward.1} parent=1 // loop_header_branch
      %20 = sbr.rel (%p18) target = $region8
    $region5: #{transformer_forward.1} parent=1 // loop_body
      %s22 = ssub.s32 %s17, 1
      %s23 = ssub.s32 %s17, 2
      %s24 = sadd.s32 %s17, 1
      %s26 = sadd.s32 %s25, 1
      %p29 = scmp.eq.s32.totalorder %s17, 1
      %p30 = scmp.ne.s32.totalorder %s25, %s27
      %p31 = scmp.eq.s32.totalorder %s17, 0
      %p32 = por %p30, %p31
      %p33 = scmp.ne.s32.totalorder %s25, %s27
      %p34 = scmp.eq.s32.totalorder %s22, 1
      %p35 = por %p33, %p34
      %p36 = scmp.ne.s32.totalorder %s27, %s28
      %p37 = scmp.eq.s32.totalorder %s22, 0
      %p38 = por %p36, %p37
      %p39 = scmp.ne.s32.totalorder %s27, %s28
      %p40 = scmp.eq.s32.totalorder %s23, 1
      %p41 = por %p39, %p40
      %p43 = scmp.ne.s32.totalorder %s28, %s42
      %p44 = scmp.eq.s32.totalorder %s23, 0
      %p45 = por %p43, %p44
      %s47 = sadd.s32 %s46, 1
      %p50 = scmp.eq.s32.totalorder %s17, 1
      %p51 = scmp.ne.s32.totalorder %s46, %s48
      %p52 = scmp.eq.s32.totalorder %s17, 0
      %p53 = por %p51, %p52
      %p54 = scmp.ne.s32.totalorder %s46, %s48
      %p55 = scmp.eq.s32.totalorder %s22, 1
      %p56 = por %p54, %p55
      %p57 = scmp.ne.s32.totalorder %s48, %s49
      %p58 = scmp.eq.s32.totalorder %s22, 0
      %p59 = por %p57, %p58
      %p60 = scmp.ne.s32.totalorder %s48, %s49
      %p61 = scmp.eq.s32.totalorder %s23, 1
      %p62 = por %p60, %p61
      %p64 = scmp.ne.s32.totalorder %s49, %s63
      %p65 = scmp.eq.s32.totalorder %s23, 0
      %p66 = por %p64, %p65
      %s68 = sadd.s32 %s67, 1
      %p71 = scmp.eq.s32.totalorder %s17, 1
      %p72 = scmp.ne.s32.totalorder %s67, %s69
      %p73 = scmp.eq.s32.totalorder %s17, 0
      %p74 = por %p72, %p73
      %p75 = scmp.ne.s32.totalorder %s67, %s69
      %p76 = scmp.eq.s32.totalorder %s22, 1
      %p77 = por %p75, %p76
      %p78 = scmp.ne.s32.totalorder %s69, %s70
      %p79 = scmp.eq.s32.totalorder %s22, 0
      %p80 = por %p78, %p79
      %p81 = scmp.ne.s32.totalorder %s69, %s70
      %p82 = scmp.eq.s32.totalorder %s23, 1
      %p83 = por %p81, %p82
      %p85 = scmp.ne.s32.totalorder %s70, %s84
      %p86 = scmp.eq.s32.totalorder %s23, 0
      %p87 = por %p85, %p86
      %s89 = sadd.s32 %s88, 1
      %p92 = scmp.eq.s32.totalorder %s17, 1
      %p93 = scmp.ne.s32.totalorder %s88, %s90
      %p94 = scmp.eq.s32.totalorder %s17, 0
      %p95 = por %p93, %p94
      %p96 = scmp.ne.s32.totalorder %s88, %s90
      %p97 = scmp.eq.s32.totalorder %s22, 1
      %p98 = por %p96, %p97
      %p99 = scmp.ne.s32.totalorder %s90, %s91
      %p100 = scmp.eq.s32.totalorder %s22, 0
      %p101 = por %p99, %p100
      %p102 = scmp.ne.s32.totalorder %s90, %s91
      %p103 = scmp.eq.s32.totalorder %s23, 1
      %p104 = por %p102, %p103
      %p106 = scmp.ne.s32.totalorder %s91, %s105
      %p107 = scmp.eq.s32.totalorder %s23, 0
      %p108 = por %p106, %p107
      %s110 = sadd.s32 %s109, 1
      %p113 = scmp.eq.s32.totalorder %s17, 1
      %p114 = scmp.ne.s32.totalorder %s109, %s111
      %p115 = scmp.eq.s32.totalorder %s17, 0
      %p116 = por %p114, %p115
      %p117 = scmp.ne.s32.totalorder %s109, %s111
      %p118 = scmp.eq.s32.totalorder %s22, 1
      %p119 = por %p117, %p118
      %p120 = scmp.ne.s32.totalorder %s111, %s112
      %p121 = scmp.eq.s32.totalorder %s22, 0
      %p122 = por %p120, %p121
      %p123 = scmp.ne.s32.totalorder %s111, %s112
      %p124 = scmp.eq.s32.totalorder %s23, 1
      %p125 = por %p123, %p124
      %p127 = scmp.ne.s32.totalorder %s112, %s126
      %p128 = scmp.eq.s32.totalorder %s23, 0
      %p129 = por %p127, %p128
      %s130 = ssub.s32 %s17, %s24
      %p131 = scmp.eq.s32.totalorder %s130, 0
      %s133 = sadd.s32 %s132, 1
      %s134 = scalar_select %p131, %s132, %s133
      %p137 = pneg %p131
      %p138 = scmp.eq.s32.totalorder %s17, 1
      %p139 = por %p137, %p138
      %p140 = scmp.ne.s32.totalorder %s132, %s135
      %p141 = scmp.eq.s32.totalorder %s17, 0
      %p142 = por %p140, %p141
      %p143 = scmp.ne.s32.totalorder %s132, %s135
      %p144 = scmp.eq.s32.totalorder %s22, 1
      %p145 = por %p143, %p144
      %p146 = scmp.ne.s32.totalorder %s135, %s136
      %p147 = scmp.eq.s32.totalorder %s22, 0
      %p148 = por %p146, %p147
      %p149 = scmp.ne.s32.totalorder %s135, %s136
      %p150 = scmp.eq.s32.totalorder %s23, 1
      %p151 = por %p149, %p150
      %p153 = scmp.ne.s32.totalorder %s136, %s152
      %p154 = scmp.eq.s32.totalorder %s23, 0
      %p155 = por %p153, %p154
      %s156 = ssub.s32 %s17, %s24
      %p157 = scmp.eq.s32.totalorder %s156, 0
      %s159 = sadd.s32 %s158, 1
      %s160 = scalar_select %p157, %s158, %s159
      %p163 = pneg %p157
      %p164 = scmp.eq.s32.totalorder %s17, 1
      %p165 = por %p163, %p164
      %p166 = scmp.ne.s32.totalorder %s158, %s161
      %p167 = scmp.eq.s32.totalorder %s17, 0
      %p168 = por %p166, %p167
      %p169 = scmp.ne.s32.totalorder %s158, %s161
      %p170 = scmp.eq.s32.totalorder %s22, 1
      %p171 = por %p169, %p170
      %p172 = scmp.ne.s32.totalorder %s161, %s162
      %p173 = scmp.eq.s32.totalorder %s22, 0
      %p174 = por %p172, %p173
      %p175 = scmp.ne.s32.totalorder %s161, %s162
      %p176 = scmp.eq.s32.totalorder %s23, 1
      %p177 = por %p175, %p176
      %p179 = scmp.ne.s32.totalorder %s162, %s178
      %p180 = scmp.eq.s32.totalorder %s23, 0
      %p181 = por %p179, %p180
      %s182 = ssub.s32 %s17, %s24
      %p183 = scmp.eq.s32.totalorder %s182, 0
      %s185 = sadd.s32 %s184, 1
      %s186 = scalar_select %p183, %s184, %s185
      %p189 = pneg %p183
      %p190 = scmp.eq.s32.totalorder %s17, 1
      %p191 = por %p189, %p190
      %p192 = scmp.ne.s32.totalorder %s184, %s187
      %p193 = scmp.eq.s32.totalorder %s17, 0
      %p194 = por %p192, %p193
      %p195 = scmp.ne.s32.totalorder %s184, %s187
      %p196 = scmp.eq.s32.totalorder %s22, 1
      %p197 = por %p195, %p196
      %p198 = scmp.ne.s32.totalorder %s187, %s188
      %p199 = scmp.eq.s32.totalorder %s22, 0
      %p200 = por %p198, %p199
      %p201 = scmp.ne.s32.totalorder %s187, %s188
      %p202 = scmp.eq.s32.totalorder %s23, 1
      %p203 = por %p201, %p202
      %p205 = scmp.ne.s32.totalorder %s188, %s204
      %p206 = scmp.eq.s32.totalorder %s23, 0
      %p207 = por %p205, %p206
      %s208 = ssub.s32 %s17, %s24
      %p209 = scmp.eq.s32.totalorder %s208, 0
      %s211 = sadd.s32 %s210, 1
      %s212 = scalar_select %p209, %s210, %s211
      %p215 = pneg %p209
      %p216 = scmp.eq.s32.totalorder %s17, 1
      %p217 = por %p215, %p216
      %p218 = scmp.ne.s32.totalorder %s210, %s213
      %p219 = scmp.eq.s32.totalorder %s17, 0
      %p220 = por %p218, %p219
      %p221 = scmp.ne.s32.totalorder %s210, %s213
      %p222 = scmp.eq.s32.totalorder %s22, 1
      %p223 = por %p221, %p222
      %p224 = scmp.ne.s32.totalorder %s213, %s214
      %p225 = scmp.eq.s32.totalorder %s22, 0
      %p226 = por %p224, %p225
      %p227 = scmp.ne.s32.totalorder %s213, %s214
      %p228 = scmp.eq.s32.totalorder %s23, 1
      %p229 = por %p227, %p228
      %p231 = scmp.ne.s32.totalorder %s214, %s230
      %p232 = scmp.eq.s32.totalorder %s23, 0
      %p233 = por %p231, %p232
      %s234 = ssub.s32 %s17, %s24
      %p235 = scmp.eq.s32.totalorder %s234, 0
      %s237 = sadd.s32 %s236, 1
      %s238 = scalar_select %p235, %s236, %s237
      %p241 = pneg %p235
      %p242 = scmp.eq.s32.totalorder %s17, 1
      %p243 = por %p241, %p242
      %p244 = scmp.ne.s32.totalorder %s236, %s239
      %p245 = scmp.eq.s32.totalorder %s17, 0
      %p246 = por %p244, %p245
      %p247 = scmp.ne.s32.totalorder %s236, %s239
      %p248 = scmp.eq.s32.totalorder %s22, 1
      %p249 = por %p247, %p248
      %p250 = scmp.ne.s32.totalorder %s239, %s240
      %p251 = scmp.eq.s32.totalorder %s22, 0
      %p252 = por %p250, %p251
      %p253 = scmp.ne.s32.totalorder %s239, %s240
      %p254 = scmp.eq.s32.totalorder %s23, 1
      %p255 = por %p253, %p254
      %p257 = scmp.ne.s32.totalorder %s240, %s256
      %p258 = scmp.eq.s32.totalorder %s23, 0
      %p259 = por %p257, %p258
      %s261 = sadd.s32 %s260, 1
      %p264 = scmp.eq.s32.totalorder %s17, 1
      %p265 = scmp.ne.s32.totalorder %s260, %s262
      %p266 = scmp.eq.s32.totalorder %s17, 0
      %p267 = por %p265, %p266
      %p268 = scmp.ne.s32.totalorder %s260, %s262
      %p269 = scmp.eq.s32.totalorder %s22, 1
      %p270 = por %p268, %p269
      %p271 = scmp.ne.s32.totalorder %s262, %s263
      %p272 = scmp.eq.s32.totalorder %s22, 0
      %p273 = por %p271, %p272
      %p274 = scmp.ne.s32.totalorder %s262, %s263
      %p275 = scmp.eq.s32.totalorder %s23, 1
      %p276 = por %p274, %p275
      %p278 = scmp.ne.s32.totalorder %s263, %s277
      %p279 = scmp.eq.s32.totalorder %s23, 0
      %p280 = por %p278, %p279
      %p281 = scmp.le.s32.totalorder 1, %s17
      %p282 = scmp.lt.s32.totalorder %s17, 3
      %p283 = pnand %p281, %p282
      %p284 = pneg %p283
      // Predicated region
      $region9: #{transformer_forward.1} parent=5 // pred_check
        _
      $region10: #{transformer_forward.1} parent=5 // pred_check_branch
        %286 = sbr.rel (%p283) target = $region12
      $region11: #{transformer_forward.1} parent=5 // pred_region
        %s287 = ssub.s32 %s17, 1
        // Predicated region
        $region13: #{transformer_forward.1} parent=11 // pred_check
          %p288 = pneg %p38
        $region14: #{transformer_forward.1} parent=11 // pred_check_branch
          %290 = sbr.rel (%p288) target = $region16
        $region15: #{transformer_forward.1} parent=11 // pred_region
          _
        $region16: #{transformer_forward.1} parent=11 // pred_fallthru
          _
        // Predicated region
        $region17: #{transformer_forward.1} parent=11 // pred_check
          %p291 = pneg %p59
        $region18: #{transformer_forward.1} parent=11 // pred_check_branch
          %293 = sbr.rel (%p291) target = $region20
        $region19: #{transformer_forward.1} parent=11 // pred_region
          _
        $region20: #{transformer_forward.1} parent=11 // pred_fallthru
          _
        // Predicated region
        $region21: #{transformer_forward.1} parent=11 // pred_check
          %p294 = pneg %p80
        $region22: #{transformer_forward.1} parent=11 // pred_check_branch
          %296 = sbr.rel (%p294) target = $region24
        $region23: #{transformer_forward.1} parent=11 // pred_region
          _
        $region24: #{transformer_forward.1} parent=11 // pred_fallthru
          _
        // Predicated region
        $region25: #{transformer_forward.1} parent=11 // pred_check
          %p297 = pneg %p101
        $region26: #{transformer_forward.1} parent=11 // pred_check_branch
          %299 = sbr.rel (%p297) target = $region28
        $region27: #{transformer_forward.1} parent=11 // pred_region
          _
        $region28: #{transformer_forward.1} parent=11 // pred_fallthru
          _
        // Predicated region
        $region29: #{transformer_forward.1} parent=11 // pred_check
          %p300 = pneg %p122
        $region30: #{transformer_forward.1} parent=11 // pred_check_branch
          %302 = sbr.rel (%p300) target = $region32
        $region31: #{transformer_forward.1} parent=11 // pred_region
          _
        $region32: #{transformer_forward.1} parent=11 // pred_fallthru
          _
      $region12: #{transformer_forward.1} parent=5 // pred_fallthru
        _
      %p303 = scmp.lt.s32.totalorder %s17, 2
      // Predicated region
      $region33: #{transformer_forward.1} parent=5 // pred_check
        %p304 = pneg %p303
      $region34: #{transformer_forward.1} parent=5 // pred_check_branch
        %306 = sbr.rel (%p304) target = $region36
      $region35: #{transformer_forward.1} parent=5 // pred_region
        // Predicated region
        $region37: #{transformer_forward.1} parent=35 // pred_check
          %p307 = pneg %p142
        $region38: #{transformer_forward.1} parent=35 // pred_check_branch
          %309 = sbr.rel (%p307) target = $region40
        $region39: #{transformer_forward.1} parent=35 // pred_region
          %p310 = scmp.lt.s32.totalorder %s17, 1
          %s311 = scalar_select %p310, %s17, 1
          %s312 = smul.addr %s311, 4
          %s313 = smul.addr %s312, 8
          %s314 = scalar_lea.vmem %s5, %s313
        $region40: #{transformer_forward.1} parent=35 // pred_fallthru
          _
        // Predicated region
        $region41: #{transformer_forward.1} parent=35 // pred_check
          %p315 = pneg %p168
        $region42: #{transformer_forward.1} parent=35 // pred_check_branch
          %317 = sbr.rel (%p315) target = $region44
        $region43: #{transformer_forward.1} parent=35 // pred_region
          %p318 = scmp.lt.s32.totalorder %s17, 1
          %s319 = scalar_select %p318, %s17, 1
          %s320 = smul.addr %s319, 4
          %s321 = smul.addr %s320, 8
          %s322 = scalar_lea.vmem %s6, %s321
        $region44: #{transformer_forward.1} parent=35 // pred_fallthru
          _
        // Predicated region
        $region45: #{transformer_forward.1} parent=35 // pred_check
          %p323 = pneg %p194
        $region46: #{transformer_forward.1} parent=35 // pred_check_branch
          %325 = sbr.rel (%p323) target = $region48
        $region47: #{transformer_forward.1} parent=35 // pred_region
          %p326 = scmp.lt.s32.totalorder %s17, 1
          %s327 = scalar_select %p326, %s17, 1
          %s328 = smul.addr %s327, 4
          %s329 = smul.addr %s328, 8
          %s330 = scalar_lea.vmem %s7, %s329
        $region48: #{transformer_forward.1} parent=35 // pred_fallthru
          _
        // Predicated region
        $region49: #{transformer_forward.1} parent=35 // pred_check
          %p331 = pneg %p220
        $region50: #{transformer_forward.1} parent=35 // pred_check_branch
          %333 = sbr.rel (%p331) target = $region52
        $region51: #{transformer_forward.1} parent=35 // pred_region
          %p334 = scmp.lt.s32.totalorder %s17, 1
          %s335 = scalar_select %p334, %s17, 1
          %s336 = smul.addr %s335, 16
          %s337 = smul.addr %s336, 8
          %s338 = scalar_lea.vmem %s8, %s337
        $region52: #{transformer_forward.1} parent=35 // pred_fallthru
          _
        // Predicated region
        $region53: #{transformer_forward.1} parent=35 // pred_check
          %p339 = pneg %p246
        $region54: #{transformer_forward.1} parent=35 // pred_check_branch
          %341 = sbr.rel (%p339) target = $region56
        $region55: #{transformer_forward.1} parent=35 // pred_region
          %p342 = scmp.lt.s32.totalorder %s17, 1
          %s343 = scalar_select %p342, %s17, 1
          %s344 = smul.addr %s343, 8
          %s345 = scalar_lea.vmem %s9, %s344
        $region56: #{transformer_forward.1} parent=35 // pred_fallthru
          _
      $region36: #{transformer_forward.1} parent=5 // pred_fallthru
        _
      %p346 = scmp.le.s32.totalorder 1, %s17
      %p347 = scmp.lt.s32.totalorder %s17, 3
      %p348 = pnand %p346, %p347
      %p349 = pneg %p348
      // Predicated region
      $region57: #{transformer_forward.1} parent=5 // pred_check
        _
      $region58: #{transformer_forward.1} parent=5 // pred_check_branch
        %351 = sbr.rel (%p348) target = $region60
      $region59: #{transformer_forward.1} parent=5 // pred_region
        %s352 = ssub.s32 %s17, 1
        %p353 = pneg %p38
        %p354 = pneg %p35
        %p355 = pneg %p59
        %p356 = pneg %p56
        %p357 = pneg %p80
        %p358 = pneg %p77
        %p359 = pneg %p101
        %p360 = pneg %p98
        %p361 = pneg %p122
        %p362 = pneg %p119
        %p363 = scmp.lt.s32.totalorder %s22, 1
        %s364 = scalar_select %p363, %s22, 1
        %s365 = smul.addr %s364, 4
        %s366 = smul.addr %s365, 8
        %s367 = scalar_lea.vmem %s5, %s366
        %p368 = pneg %p148
        %p369 = pneg %p145
        %p370 = scmp.lt.s32.totalorder %s22, 1
        %s371 = scalar_select %p370, %s22, 1
        %s372 = smul.addr %s371, 4
        %s373 = smul.addr %s372, 8
        %s374 = scalar_lea.vmem %s6, %s373
        %p375 = pneg %p174
        %p376 = pneg %p171
        %p377 = scmp.lt.s32.totalorder %s22, 1
        %s378 = scalar_select %p377, %s22, 1
        %s379 = smul.addr %s378, 4
        %s380 = smul.addr %s379, 8
        %s381 = scalar_lea.vmem %s7, %s380
        %p382 = pneg %p200
        %p383 = pneg %p197
        %p384 = scmp.lt.s32.totalorder %s22, 1
        %s385 = scalar_select %p384, %s22, 1
        %s386 = smul.addr %s385, 16
        %s387 = smul.addr %s386, 8
        %s388 = scalar_lea.vmem %s8, %s387
        %p389 = pneg %p226
        %p390 = pneg %p223
        %p391 = scmp.lt.s32.totalorder %s22, 1
        %s392 = scalar_select %p391, %s22, 1
        %s393 = smul.addr %s392, 8
        %s394 = scalar_lea.vmem %s9, %s393
        %p395 = pneg %p252
        %p396 = pneg %p249
        %p397 = pneg %p273
        %p398 = pneg %p270
        %p399 = scmp.lt.s32.totalorder %s22, 1
        %s400 = scalar_select %p399, %s22, 1
        %s401 = smul.addr %s400, 4
        %s402 = smul.addr %s401, 8
        %s403 = scalar_lea.vmem %s5, %s402
        %p404 = scmp.lt.s32.totalorder %s22, 1
        %s405 = scalar_select %p404, %s22, 1
        %s406 = smul.addr %s405, 4
        %s407 = smul.addr %s406, 8
        %s408 = scalar_lea.vmem %s6, %s407
        %p409 = scmp.lt.s32.totalorder %s22, 1
        %s410 = scalar_select %p409, %s22, 1
        %s411 = smul.addr %s410, 4
        %s412 = smul.addr %s411, 8
        %s413 = scalar_lea.vmem %s7, %s412
        %p414 = scmp.lt.s32.totalorder %s22, 1
        %s415 = scalar_select %p414, %s22, 1
        %s416 = smul.addr %s415, 16
        %s417 = smul.addr %s416, 8
        %s418 = scalar_lea.vmem %s8, %s417
        %p419 = scmp.lt.s32.totalorder %s22, 1
        %s420 = scalar_select %p419, %s22, 1
        %s421 = smul.addr %s420, 8
        %s422 = scalar_lea.vmem %s9, %s421
        %p423 = scmp.eq.s32.totalorder %s22, 0
        // Predicated region
        $region61: #{transformer_forward.1} parent=59 // pred_check
          %p424 = pneg %p423
        $region62: #{transformer_forward.1} parent=59 // pred_check_branch
          %426 = sbr.rel (%p424) target = $region64
        $region63: #{transformer_forward.1} parent=59 // pred_region
          %v427 = vld [vmem:[%s0] sm:$0xff]
          %v428 = vld [vmem:[%s0 + $0x8] sm:$0xff]
          %vm429 = vcmask 261120
          %430 = vst.msk [vmem:[#allocation2] sm:$0xff] %vm429, %v427
          %431 = vst.msk [vmem:[#allocation2 + $0x8] sm:$0xff] %vm429, %v428
        $region64: #{transformer_forward.1} parent=59 // pred_fallthru
          _
        %v432 = vld [vmem:[#allocation2] sm:$0xff]
        %v433 = vld [vmem:[#allocation2 + $0x8] sm:$0xff]
        %v434 = vld [vmem:[%s1] sm:$0xff]
        %v435 = vld [vmem:[%s1 + $0x8] sm:$0xff]
        %v436 = vld [vmem:[%s1 + $0x10] sm:$0xff]
        %v437 = vld [vmem:[%s1 + $0x18] sm:$0xff]
        %v438 = vld [vmem:[%s1 + $0x20] sm:$0xff]
        %v439 = vld [vmem:[%s1 + $0x28] sm:$0xff]
        %v440 = vld [vmem:[%s1 + $0x30] sm:$0xff]
        %v441 = vld [vmem:[%s1 + $0x38] sm:$0xff]
        %v442 = vld [vmem:[%s2] sm:$0xff]
        %v443 = vld [vmem:[%s2 + $0x8] sm:$0xff]
        %v444 = vld [vmem:[%s422] sm:$0xff]
        %vm445 = vcmask 261120
        %v446 = vsel %vm445, %v432, 0.0
        %447 = vadd.xlane.f32.xlu0 %v446
        %v448 = vpop.xlane.xlu0 %447
        %v449 = vsel %vm445, %v433, 0.0
        %450 = vadd.xlane.f32.xlu0 %v449
        %v451 = vpop.xlane.xlu0 %450
        %v452 = vrcp.pop 32.0
        %v453 = vmul.f32 %v448, %v452
        %v454 = vmul.f32 %v451, %v452
        %v455 = vsub.f32 %v432, %v453
        %v456 = vsub.f32 %v433, %v454
        %v457 = vmul.f32 %v455, %v455
        %v458 = vmul.f32 %v456, %v456
        %v459 = vsel %vm445, %v457, 0.0
        %460 = vadd.xlane.f32.xlu0 %v459
        %v461 = vpop.xlane.xlu0 %460
        %v462 = vsel %vm445, %v458, 0.0
        %463 = vadd.xlane.f32.xlu0 %v462
        %v464 = vpop.xlane.xlu0 %463
        %v465 = vmul.f32 %v461, %v452
        %v466 = vmul.f32 %v464, %v452
        %v467 = vadd.f32 %v465, 1e-05
        %v468 = vadd.f32 %v466, 1e-05
        %v469 = vrsqrt.pop %v467
        %v470 = vrsqrt.pop %v468
        %v471 = vmul.f32 %v455, %v469
        %v472 = vmul.f32 %v456, %v470
        %v473 = vld [vmem:[%s403] sm:$0xff]
        %v474 = vld [vmem:[%s403 + $0x8] sm:$0xff]
        %v475 = vld [vmem:[%s403 + $0x10] sm:$0xff]
        %v476 = vld [vmem:[%s403 + $0x18] sm:$0xff]
        %v477 = vlaneseq
        %v478 = vshrl.u32 %v477, 7
        %v479 = vsub.s32 0, %v478
        %v480 = vrot.slane %v444, %v479
        %v482 = vsel %vm445, %v471, 0
        %v485 = vsel %vm445, %v472, 0
        %487 = vmatprep.subr.mxu0 0.0
        %488 = vmatpush1.msra.mxu0 0.0
        %489 = vmatprep.subr.mxu0 0.0
        %490 = vmatpush1.msra.mxu0 0.0
        %491 = vmatprep.subr.mxu0 0.0
        %492 = vmatpush1.msra.mxu0 0.0
        %493 = vmatprep.subr.mxu0 0.0
        %494 = vmatpush1.msra.mxu0 0.0
        %495 = vmatprep.subr.mxu0 0.0
        %496 = vmatpush1.msra.mxu0 0.0
        %497 = vmatprep.subr.mxu0 0.0
        %498 = vmatpush1.msra.mxu0 0.0
        %499 = vmatprep.subr.mxu0 0.0
        %500 = vmatpush1.msra.mxu0 0.0
        %501 = vmatprep.subr.mxu0 0.0
        %502 = vmatpush1.msra.mxu0 0.0
        %503 = vmatprep.subr.mxu0 0.0
        %504 = vmatpush1.msra.mxu0 0.0
        %505 = vmatprep.subr.mxu0 0.0
        %506 = vmatpush1.msra.mxu0 0.0
        %507 = vmatprep.subr.mxu0 0.0
        %508 = vmatpush1.msra.mxu0 0.0
        %509 = vmatprep.subr.mxu0 0.0
        %510 = vmatpush1.msra.mxu0 0.0
        %511 = vmatprep.subr.mxu0 0.0
        %512 = vmatpush1.msra.mxu0 %v476
        %513 = vmatprep.subr.mxu0 0.0
        %514 = vmatpush1.msra.mxu0 %v475
        %515 = vmatprep.subr.mxu0 0.0
        %516 = vmatpush1.msra.mxu0 %v474
        %517 = vmatprep.subr.mxu0 0.0
        %518 = vmatpush1.msra.mxu0 %v473
        %519 = vmatprep.subr.mxu0 0.0
        %520 = vmatpush2.msra.mxu0 0.0
        %521 = vmatprep.subr.mxu0 0.0
        %522 = vmatpush2.msra.mxu0 0.0
        %523 = vmatprep.subr.mxu0 0.0
        %524 = vmatpush2.msra.mxu0 0.0
        %525 = vmatprep.subr.mxu0 0.0
        %526 = vmatpush2.msra.mxu0 0.0
        %527 = vmatprep.subr.mxu0 0.0
        %528 = vmatpush2.msra.mxu0 0.0
        %529 = vmatprep.subr.mxu0 0.0
        %530 = vmatpush2.msra.mxu0 0.0
        %531 = vmatprep.subr.mxu0 0.0
        %532 = vmatpush2.msra.mxu0 0.0
        %533 = vmatprep.subr.mxu0 0.0
        %534 = vmatpush2.msra.mxu0 0.0
        %535 = vmatprep.subr.mxu0 0.0
        %536 = vmatpush2.msra.mxu0 0.0
        %537 = vmatprep.subr.mxu0 0.0
        %538 = vmatpush2.msra.mxu0 0.0
        %539 = vmatprep.subr.mxu0 0.0
        %540 = vmatpush2.msra.mxu0 0.0
        %541 = vmatprep.subr.mxu0 0.0
        %542 = vmatpush2.msra.mxu0 0.0
        %543 = vmatprep.subr.mxu0 0.0
        %544 = vmatpush2.msra.mxu0 0.0
        %545 = vmatprep.subr.mxu0 0.0
        %546 = vmatpush2.msra.mxu0 0.0
        %547 = vmatprep.subr.mxu0 0.0
        %548 = vmatpush2.msra.mxu0 0.0
        %549 = vmatprep.subr.mxu0 0.0
        %550 = vmatpush2.msra.mxu0 0.0
        %551 = vmatprep.mubr.f32.mxu0 0.0
        %552 = vmatmul.mubr.f32.gmra.mxu0 %v482
        %v553 = vpop.f32.mrf.mxu0
        %v554 = vadd.f32 %v480, %v553
        %v555 = vpop.f32.mrf.mxu0
        %556 = vmatprep.mubr.f32.mxu0 0.0
        %557 = vmatmul.mubr.f32.gmra.mxu0 %v485
        %v558 = vpop.f32.mrf.mxu0
        %v559 = vadd.f32 %v480, %v558
        %v560 = vpop.f32.mrf.mxu0
        %561 = vdwg.mxu0
        %570 = vrot.lane.b32.xlu0 %v434, 32
        %v571 = vpop.permute.xlu0 %570
        %572 = vrot.lane.b32.xlu0 %v435, 32
        %v573 = vpop.permute.xlu0 %572
        %574 = vrot.lane.b32.xlu0 %v436, 32
        %v575 = vpop.permute.xlu0 %574
        %576 = vrot.lane.b32.xlu0 %v437, 32
        %v577 = vpop.permute.xlu0 %576
        %578 = vrot.lane.b32.xlu0 %v438, 32
        %v579 = vpop.permute.xlu0 %578
        %580 = vrot.lane.b32.xlu0 %v439, 32
        %v581 = vpop.permute.xlu0 %580
        %582 = vrot.lane.b32.xlu0 %v440, 32
        %v583 = vpop.permute.xlu0 %582
        %584 = vrot.lane.b32.xlu0 %v441, 32
        %v585 = vpop.permute.xlu0 %584
        %v594 = vmul.f32 %v554, %v571
        %v595 = vmul.f32 %v559, %v573
        %v596 = vmul.f32 %v554, %v575
        %v597 = vmul.f32 %v559, %v577
        %v598 = vmul.f32 %v554, %v579
        %v599 = vmul.f32 %v559, %v581
        %v600 = vmul.f32 %v554, %v583
        %v601 = vmul.f32 %v559, %v585
        %602 = vrot.lane.b32.xlu0 %v434, 64
        %v603 = vpop.permute.xlu0 %602
        %604 = vrot.lane.b32.xlu0 %v435, 64
        %v605 = vpop.permute.xlu0 %604
        %606 = vrot.lane.b32.xlu0 %v436, 64
        %v607 = vpop.permute.xlu0 %606
        %608 = vrot.lane.b32.xlu0 %v437, 64
        %v609 = vpop.permute.xlu0 %608
        %610 = vrot.lane.b32.xlu0 %v438, 64
        %v611 = vpop.permute.xlu0 %610
        %612 = vrot.lane.b32.xlu0 %v439, 64
        %v613 = vpop.permute.xlu0 %612
        %614 = vrot.lane.b32.xlu0 %v440, 64
        %v615 = vpop.permute.xlu0 %614
        %616 = vrot.lane.b32.xlu0 %v441, 64
        %v617 = vpop.permute.xlu0 %616
        %v626 = vmul.f32 %v554, %v603
        %v627 = vmul.f32 %v559, %v605
        %v628 = vmul.f32 %v554, %v607
        %v629 = vmul.f32 %v559, %v609
        %v630 = vmul.f32 %v554, %v611
        %v631 = vmul.f32 %v559, %v613
        %v632 = vmul.f32 %v554, %v615
        %v633 = vmul.f32 %v559, %v617
        %642 = vrot.lane.b32.xlu0 %v594, 96
        %v643 = vpop.permute.xlu0 %642
        %644 = vrot.lane.b32.xlu0 %v595, 96
        %v645 = vpop.permute.xlu0 %644
        %646 = vrot.lane.b32.xlu0 %v596, 96
        %v647 = vpop.permute.xlu0 %646
        %648 = vrot.lane.b32.xlu0 %v597, 96
        %v649 = vpop.permute.xlu0 %648
        %650 = vrot.lane.b32.xlu0 %v598, 96
        %v651 = vpop.permute.xlu0 %650
        %652 = vrot.lane.b32.xlu0 %v599, 96
        %v653 = vpop.permute.xlu0 %652
        %654 = vrot.lane.b32.xlu0 %v600, 96
        %v655 = vpop.permute.xlu0 %654
        %656 = vrot.lane.b32.xlu0 %v601, 96
        %v657 = vpop.permute.xlu0 %656
        %v659 = vsel %vm445, %v554, 0
        %v662 = vsel %vm445, %v559, 0
        %v664 = vsel %vm445, %v643, 0
        %v666 = vsel %vm445, %v645, 0
        %v668 = vsel %vm445, %v647, 0
        %v670 = vsel %vm445, %v649, 0
        %v672 = vsel %vm445, %v651, 0
        %v674 = vsel %vm445, %v653, 0
        %v676 = vsel %vm445, %v655, 0
        %v678 = vsel %vm445, %v657, 0
        %680 = vmatprep.subr.mxu0 0.0
        %681 = vmatpush1.xpose.msra.mxu0 0.0
        %682 = vmatprep.subr.mxu0 0.0
        %683 = vmatpush1.xpose.msra.mxu0 0.0
        %684 = vmatprep.subr.mxu0 0.0
        %685 = vmatpush1.xpose.msra.mxu0 0.0
        %686 = vmatprep.subr.mxu0 0.0
        %687 = vmatpush1.xpose.msra.mxu0 0.0
        %688 = vmatprep.subr.mxu0 0.0
        %689 = vmatpush1.xpose.msra.mxu0 0.0
        %690 = vmatprep.subr.mxu0 0.0
        %691 = vmatpush1.xpose.msra.mxu0 0.0
        %692 = vmatprep.subr.mxu0 0.0
        %693 = vmatpush1.xpose.msra.mxu0 0.0
        %694 = vmatprep.subr.mxu0 0.0
        %695 = vmatpush1.xpose.msra.mxu0 0.0
        %696 = vmatprep.subr.mxu0 0.0
        %697 = vmatpush1.xpose.msra.mxu0 %v678
        %698 = vmatprep.subr.mxu0 0.0
        %699 = vmatpush1.xpose.msra.mxu0 %v676
        %700 = vmatprep.subr.mxu0 0.0
        %701 = vmatpush1.xpose.msra.mxu0 %v674
        %702 = vmatprep.subr.mxu0 0.0
        %703 = vmatpush1.xpose.msra.mxu0 %v672
        %704 = vmatprep.subr.mxu0 0.0
        %705 = vmatpush1.xpose.msra.mxu0 %v670
        %706 = vmatprep.subr.mxu0 0.0
        %707 = vmatpush1.xpose.msra.mxu0 %v668
        %708 = vmatprep.subr.mxu0 0.0
        %709 = vmatpush1.xpose.msra.mxu0 %v666
        %710 = vmatprep.subr.mxu0 0.0
        %711 = vmatpush1.xpose.msra.mxu0 %v664
        %712 = vmatprep.subr.mxu0 0.0
        %713 = vmatpush2.xpose.msra.mxu0 0.0
        %714 = vmatprep.subr.mxu0 0.0
        %715 = vmatpush2.xpose.msra.mxu0 0.0
        %716 = vmatprep.subr.mxu0 0.0
        %717 = vmatpush2.xpose.msra.mxu0 0.0
        %718 = vmatprep.subr.mxu0 0.0
        %719 = vmatpush2.xpose.msra.mxu0 0.0
        %720 = vmatprep.subr.mxu0 0.0
        %721 = vmatpush2.xpose.msra.mxu0 0.0
        %722 = vmatprep.subr.mxu0 0.0
        %723 = vmatpush2.xpose.msra.mxu0 0.0
        %724 = vmatprep.subr.mxu0 0.0
        %725 = vmatpush2.xpose.msra.mxu0 0.0
        %726 = vmatprep.subr.mxu0 0.0
        %727 = vmatpush2.xpose.msra.mxu0 0.0
        %728 = vmatprep.subr.mxu0 0.0
        %729 = vmatpush2.xpose.msra.mxu0 0.0
        %730 = vmatprep.subr.mxu0 0.0
        %731 = vmatpush2.xpose.msra.mxu0 0.0
        %732 = vmatprep.subr.mxu0 0.0
        %733 = vmatpush2.xpose.msra.mxu0 0.0
        %734 = vmatprep.subr.mxu0 0.0
        %735 = vmatpush2.xpose.msra.mxu0 0.0
        %736 = vmatprep.subr.mxu0 0.0
        %737 = vmatpush2.xpose.msra.mxu0 0.0
        %738 = vmatprep.subr.mxu0 0.0
        %739 = vmatpush2.xpose.msra.mxu0 0.0
        %740 = vmatprep.subr.mxu0 0.0
        %741 = vmatpush2.xpose.msra.mxu0 0.0
        %742 = vmatprep.subr.mxu0 0.0
        %743 = vmatpush2.xpose.msra.mxu0 0.0
        %744 = vmatprep.mubr.f32.mxu0 0.0
        %745 = vmatmul.mubr.f32.gmra.mxu0 %v659
        %v746 = vpop.f32.mrf.mxu0
        %v747 = vadd.f32 %v442, %v746
        %v748 = vpop.f32.mrf.mxu0
        %749 = vmatprep.mubr.f32.mxu0 0.0
        %750 = vmatmul.mubr.f32.gmra.mxu0 %v662
        %v751 = vpop.f32.mrf.mxu0
        %v752 = vadd.f32 %v443, %v751
        %v753 = vpop.f32.mrf.mxu0
        %754 = vdwg.mxu0
        %vm755 = vcmask 523264
        %v756 = vsel %vm755, %v747, -inf
        %757 = vmax.xlane.f32.xlu0 %v756
        %v758 = vpop.xlane.xlu0 %757
        %v759 = vsel %vm755, %v752, -inf
        %760 = vmax.xlane.f32.xlu0 %v759
        %v761 = vpop.xlane.xlu0 %760
        %v762 = vsub.f32 %v747, %v758
        %v763 = vsub.f32 %v752, %v761
        %v764 = vmul.f32 %v762, 1.442695
        %v765 = vpow.pop %v764
        %v766 = vmul.f32 %v763, 1.442695
        %v767 = vpow.pop %v766
        %776 = vrot.lane.b32.xlu0 %v626, 64
        %v777 = vpop.permute.xlu0 %776
        %778 = vrot.lane.b32.xlu0 %v627, 64
        %v779 = vpop.permute.xlu0 %778
        %780 = vrot.lane.b32.xlu0 %v628, 64
        %v781 = vpop.permute.xlu0 %780
        %782 = vrot.lane.b32.xlu0 %v629, 64
        %v783 = vpop.permute.xlu0 %782
        %784 = vrot.lane.b32.xlu0 %v630, 64
        %v785 = vpop.permute.xlu0 %784
        %786 = vrot.lane.b32.xlu0 %v631, 64
        %v787 = vpop.permute.xlu0 %786
        %788 = vrot.lane.b32.xlu0 %v632, 64
        %v789 = vpop.permute.xlu0 %788
        %790 = vrot.lane.b32.xlu0 %v633, 64
        %v791 = vpop.permute.xlu0 %790
        %v801 = vsel %vm755, %v765, 0
        %v804 = vsel %vm755, %v767, 0
        %806 = vmatprep.subr.mxu0 0.0
        %807 = vmatpush1.msra.mxu0 0.0
        %808 = vmatprep.subr.mxu0 0.0
        %809 = vmatpush1.msra.mxu0 0.0
        %810 = vmatprep.subr.mxu0 0.0
        %811 = vmatpush1.msra.mxu0 0.0
        %812 = vmatprep.subr.mxu0 0.0
        %813 = vmatpush1.msra.mxu0 0.0
        %814 = vmatprep.subr.mxu0 0.0
        %815 = vmatpush1.msra.mxu0 0.0
        %816 = vmatprep.subr.mxu0 0.0
        %817 = vmatpush1.msra.mxu0 0.0
        %818 = vmatprep.subr.mxu0 0.0
        %819 = vmatpush1.msra.mxu0 0.0
        %820 = vmatprep.subr.mxu0 0.0
        %821 = vmatpush1.msra.mxu0 0.0
        %822 = vmatprep.subr.mxu0 0.0
        %823 = vmatpush1.msra.mxu0 %v791
        %824 = vmatprep.subr.mxu0 0.0
        %825 = vmatpush1.msra.mxu0 %v789
        %826 = vmatprep.subr.mxu0 0.0
        %827 = vmatpush1.msra.mxu0 %v787
        %828 = vmatprep.subr.mxu0 0.0
        %829 = vmatpush1.msra.mxu0 %v785
        %830 = vmatprep.subr.mxu0 0.0
        %831 = vmatpush1.msra.mxu0 %v783
        %832 = vmatprep.subr.mxu0 0.0
        %833 = vmatpush1.msra.mxu0 %v781
        %834 = vmatprep.subr.mxu0 0.0
        %835 = vmatpush1.msra.mxu0 %v779
        %836 = vmatprep.subr.mxu0 0.0
        %837 = vmatpush1.msra.mxu0 %v777
        %838 = vmatprep.subr.mxu0 0.0
        %839 = vmatpush2.msra.mxu0 0.0
        %840 = vmatprep.subr.mxu0 0.0
        %841 = vmatpush2.msra.mxu0 0.0
        %842 = vmatprep.subr.mxu0 0.0
        %843 = vmatpush2.msra.mxu0 0.0
        %844 = vmatprep.subr.mxu0 0.0
        %845 = vmatpush2.msra.mxu0 0.0
        %846 = vmatprep.subr.mxu0 0.0
        %847 = vmatpush2.msra.mxu0 0.0
        %848 = vmatprep.subr.mxu0 0.0
        %849 = vmatpush2.msra.mxu0 0.0
        %850 = vmatprep.subr.mxu0 0.0
        %851 = vmatpush2.msra.mxu0 0.0
        %852 = vmatprep.subr.mxu0 0.0
        %853 = vmatpush2.msra.mxu0 0.0
        %854 = vmatprep.subr.mxu0 0.0
        %855 = vmatpush2.msra.mxu0 0.0
        %856 = vmatprep.subr.mxu0 0.0
        %857 = vmatpush2.msra.mxu0 0.0
        %858 = vmatprep.subr.mxu0 0.0
        %859 = vmatpush2.msra.mxu0 0.0
        %860 = vmatprep.subr.mxu0 0.0
        %861 = vmatpush2.msra.mxu0 0.0
        %862 = vmatprep.subr.mxu0 0.0
        %863 = vmatpush2.msra.mxu0 0.0
        %864 = vmatprep.subr.mxu0 0.0
        %865 = vmatpush2.msra.mxu0 0.0
        %866 = vmatprep.subr.mxu0 0.0
        %867 = vmatpush2.msra.mxu0 0.0
        %868 = vmatprep.subr.mxu0 0.0
        %869 = vmatpush2.msra.mxu0 0.0
        %870 = vmatprep.mubr.f32.mxu0 0.0
        %871 = vmatmul.mubr.f32.gmra.mxu0 %v801
        %v872 = vpop.f32.mrf.mxu0
        %v873 = vadd.f32 0.0, %v872
        %v874 = vpop.f32.mrf.mxu0
        %875 = vmatprep.mubr.f32.mxu0 0.0
        %876 = vmatmul.mubr.f32.gmra.mxu0 %v804
        %v877 = vpop.f32.mrf.mxu0
        %v878 = vadd.f32 0.0, %v877
        %v879 = vpop.f32.mrf.mxu0
        %880 = vdwg.mxu0
        %881 = vmatprep.subr.mxu0 0.0
        %882 = vmatpush1.msra.mxu0 0.0
        %883 = vmatprep.subr.mxu0 0.0
        %884 = vmatpush1.msra.mxu0 0.0
        %885 = vmatprep.subr.mxu0 0.0
        %886 = vmatpush1.msra.mxu0 0.0
        %887 = vmatprep.subr.mxu0 0.0
        %888 = vmatpush1.msra.mxu0 0.0
        %889 = vmatprep.subr.mxu0 0.0
        %890 = vmatpush1.msra.mxu0 0.0
        %891 = vmatprep.subr.mxu0 0.0
        %892 = vmatpush1.msra.mxu0 0.0
        %893 = vmatprep.subr.mxu0 0.0
        %894 = vmatpush1.msra.mxu0 0.0
        %895 = vmatprep.subr.mxu0 0.0
        %896 = vmatpush1.msra.mxu0 0.0
        %897 = vmatprep.subr.mxu0 0.0
        %898 = vmatpush1.msra.mxu0 %v441
        %899 = vmatprep.subr.mxu0 0.0
        %900 = vmatpush1.msra.mxu0 %v440
        %901 = vmatprep.subr.mxu0 0.0
        %902 = vmatpush1.msra.mxu0 %v439
        %903 = vmatprep.subr.mxu0 0.0
        %904 = vmatpush1.msra.mxu0 %v438
        %905 = vmatprep.subr.mxu0 0.0
        %906 = vmatpush1.msra.mxu0 %v437
        %907 = vmatprep.subr.mxu0 0.0
        %908 = vmatpush1.msra.mxu0 %v436
        %909 = vmatprep.subr.mxu0 0.0
        %910 = vmatpush1.msra.mxu0 %v435
        %911 = vmatprep.subr.mxu0 0.0
        %912 = vmatpush1.msra.mxu0 %v434
        %913 = vmatprep.subr.mxu0 0.0
        %914 = vmatpush2.msra.mxu0 0.0
        %915 = vmatprep.subr.mxu0 0.0
        %916 = vmatpush2.msra.mxu0 0.0
        %917 = vmatprep.subr.mxu0 0.0
        %918 = vmatpush2.msra.mxu0 0.0
        %919 = vmatprep.subr.mxu0 0.0
        %920 = vmatpush2.msra.mxu0 0.0
        %921 = vmatprep.subr.mxu0 0.0
        %922 = vmatpush2.msra.mxu0 0.0
        %923 = vmatprep.subr.mxu0 0.0
        %924 = vmatpush2.msra.mxu0 0.0
        %925 = vmatprep.subr.mxu0 0.0
        %926 = vmatpush2.msra.mxu0 0.0
        %927 = vmatprep.subr.mxu0 0.0
        %928 = vmatpush2.msra.mxu0 0.0
        %929 = vmatprep.subr.mxu0 0.0
        %930 = vmatpush2.msra.mxu0 0.0
        %931 = vmatprep.subr.mxu0 0.0
        %932 = vmatpush2.msra.mxu0 0.0
        %933 = vmatprep.subr.mxu0 0.0
        %934 = vmatpush2.msra.mxu0 0.0
        %935 = vmatprep.subr.mxu0 0.0
        %936 = vmatpush2.msra.mxu0 0.0
        %937 = vmatprep.subr.mxu0 0.0
        %938 = vmatpush2.msra.mxu0 0.0
        %939 = vmatprep.subr.mxu0 0.0
        %940 = vmatpush2.msra.mxu0 0.0
        %941 = vmatprep.subr.mxu0 0.0
        %942 = vmatpush2.msra.mxu0 0.0
        %943 = vmatprep.subr.mxu0 0.0
        %944 = vmatpush2.msra.mxu0 0.0
        %945 = vmatprep.mubr.f32.mxu0 0.0
        %946 = vmatmul.mubr.f32.gmra.mxu0 %v801
        %v947 = vpop.f32.mrf.mxu0
        %v948 = vadd.f32 0.0, %v947
        %v949 = vpop.f32.mrf.mxu0
        %950 = vmatprep.mubr.f32.mxu0 0.0
        %951 = vmatmul.mubr.f32.gmra.mxu0 %v804
        %v952 = vpop.f32.mrf.mxu0
        %v953 = vadd.f32 0.0, %v952
        %v954 = vpop.f32.mrf.mxu0
        %955 = vdwg.mxu0
        %v956 = vmax.f32 %v948, 1e-30
        %v957 = vmax.f32 %v953, 1e-30
        %v958 = vrcp.pop %v956
        %v959 = vrcp.pop %v957
        %v960 = vmul.f32 %v873, %v958
        %v961 = vmul.f32 %v878, %v959
        %v962 = vld [vmem:[%s408] sm:$0xff]
        %v963 = vld [vmem:[%s408 + $0x8] sm:$0xff]
        %v964 = vld [vmem:[%s408 + $0x10] sm:$0xff]
        %v965 = vld [vmem:[%s408 + $0x18] sm:$0xff]
        %v966 = vlaneseq
        %v967 = vshrl.u32 %v966, 7
        %v968 = vsub.s32 1, %v967
        %v969 = vrot.slane %v444, %v968
        %v971 = vsel %vm445, %v960, 0
        %v974 = vsel %vm445, %v961, 0
        %976 = vmatprep.subr.mxu0 0.0
        %977 = vmatpush1.msra.mxu0 0.0
        %978 = vmatprep.subr.mxu0 0.0
        %979 = vmatpush1.msra.mxu0 0.0
        %980 = vmatprep.subr.mxu0 0.0
        %981 = vmatpush1.msra.mxu0 0.0
        %982 = vmatprep.subr.mxu0 0.0
        %983 = vmatpush1.msra.mxu0 0.0
        %984 = vmatprep.subr.mxu0 0.0
        %985 = vmatpush1.msra.mxu0 0.0
        %986 = vmatprep.subr.mxu0 0.0
        %987 = vmatpush1.msra.mxu0 0.0
        %988 = vmatprep.subr.mxu0 0.0
        %989 = vmatpush1.msra.mxu0 0.0
        %990 = vmatprep.subr.mxu0 0.0
        %991 = vmatpush1.msra.mxu0 0.0
        %992 = vmatprep.subr.mxu0 0.0
        %993 = vmatpush1.msra.mxu0 0.0
        %994 = vmatprep.subr.mxu0 0.0
        %995 = vmatpush1.msra.mxu0 0.0
        %996 = vmatprep.subr.mxu0 0.0
        %997 = vmatpush1.msra.mxu0 0.0
        %998 = vmatprep.subr.mxu0 0.0
        %999 = vmatpush1.msra.mxu0 0.0
        %1000 = vmatprep.subr.mxu0 0.0
        %1001 = vmatpush1.msra.mxu0 %v965
        %1002 = vmatprep.subr.mxu0 0.0
        %1003 = vmatpush1.msra.mxu0 %v964
        %1004 = vmatprep.subr.mxu0 0.0
        %1005 = vmatpush1.msra.mxu0 %v963
        %1006 = vmatprep.subr.mxu0 0.0
        %1007 = vmatpush1.msra.mxu0 %v962
        %1008 = vmatprep.subr.mxu0 0.0
        %1009 = vmatpush2.msra.mxu0 0.0
        %1010 = vmatprep.subr.mxu0 0.0
        %1011 = vmatpush2.msra.mxu0 0.0
        %1012 = vmatprep.subr.mxu0 0.0
        %1013 = vmatpush2.msra.mxu0 0.0
        %1014 = vmatprep.subr.mxu0 0.0
        %1015 = vmatpush2.msra.mxu0 0.0
        %1016 = vmatprep.subr.mxu0 0.0
        %1017 = vmatpush2.msra.mxu0 0.0
        %1018 = vmatprep.subr.mxu0 0.0
        %1019 = vmatpush2.msra.mxu0 0.0
        %1020 = vmatprep.subr.mxu0 0.0
        %1021 = vmatpush2.msra.mxu0 0.0
        %1022 = vmatprep.subr.mxu0 0.0
        %1023 = vmatpush2.msra.mxu0 0.0
        %1024 = vmatprep.subr.mxu0 0.0
        %1025 = vmatpush2.msra.mxu0 0.0
        %1026 = vmatprep.subr.mxu0 0.0
        %1027 = vmatpush2.msra.mxu0 0.0
        %1028 = vmatprep.subr.mxu0 0.0
        %1029 = vmatpush2.msra.mxu0 0.0
        %1030 = vmatprep.subr.mxu0 0.0
        %1031 = vmatpush2.msra.mxu0 0.0
        %1032 = vmatprep.subr.mxu0 0.0
        %1033 = vmatpush2.msra.mxu0 0.0
        %1034 = vmatprep.subr.mxu0 0.0
        %1035 = vmatpush2.msra.mxu0 0.0
        %1036 = vmatprep.subr.mxu0 0.0
        %1037 = vmatpush2.msra.mxu0 0.0
        %1038 = vmatprep.subr.mxu0 0.0
        %1039 = vmatpush2.msra.mxu0 0.0
        %1040 = vmatprep.mubr.f32.mxu0 0.0
        %1041 = vmatmul.mubr.f32.gmra.mxu0 %v971
        %v1042 = vpop.f32.mrf.mxu0
        %v1043 = vadd.f32 %v969, %v1042
        %v1044 = vpop.f32.mrf.mxu0
        %1045 = vmatprep.mubr.f32.mxu0 0.0
        %1046 = vmatmul.mubr.f32.gmra.mxu0 %v974
        %v1047 = vpop.f32.mrf.mxu0
        %v1048 = vadd.f32 %v969, %v1047
        %v1049 = vpop.f32.mrf.mxu0
        %1050 = vdwg.mxu0
        %v1051 = vadd.f32 %v432, %v1043
        %v1052 = vadd.f32 %v433, %v1048
        %v1053 = vsel %vm445, %v1051, 0.0
        %1054 = vadd.xlane.f32.xlu0 %v1053
        %v1055 = vpop.xlane.xlu0 %1054
        %v1056 = vsel %vm445, %v1052, 0.0
        %1057 = vadd.xlane.f32.xlu0 %v1056
        %v1058 = vpop.xlane.xlu0 %1057
        %v1059 = vmul.f32 %v1055, %v452
        %v1060 = vmul.f32 %v1058, %v452
        %v1061 = vsub.f32 %v1051, %v1059
        %v1062 = vsub.f32 %v1052, %v1060
        %v1063 = vmul.f32 %v1061, %v1061
        %v1064 = vmul.f32 %v1062, %v1062
        %v1065 = vsel %vm445, %v1063, 0.0
        %1066 = vadd.xlane.f32.xlu0 %v1065
        %v1067 = vpop.xlane.xlu0 %1066
        %v1068 = vsel %vm445, %v1064, 0.0
        %1069 = vadd.xlane.f32.xlu0 %v1068
        %v1070 = vpop.xlane.xlu0 %1069
        %v1071 = vmul.f32 %v1067, %v452
        %v1072 = vmul.f32 %v1070, %v452
        %v1073 = vadd.f32 %v1071, 1e-05
        %v1074 = vadd.f32 %v1072, 1e-05
        %v1075 = vrsqrt.pop %v1073
        %v1076 = vrsqrt.pop %v1074
        %v1077 = vmul.f32 %v1061, %v1075
        %v1078 = vmul.f32 %v1062, %v1076
        %v1079 = vld [vmem:[%s413] sm:$0xff]
        %v1080 = vld [vmem:[%s413 + $0x8] sm:$0xff]
        %v1081 = vld [vmem:[%s413 + $0x10] sm:$0xff]
        %v1082 = vld [vmem:[%s413 + $0x18] sm:$0xff]
        %v1083 = vlaneseq
        %v1084 = vshrl.u32 %v1083, 7
        %v1085 = vsub.s32 2, %v1084
        %v1086 = vrot.slane %v444, %v1085
        %v1088 = vsel %vm445, %v1077, 0
        %v1091 = vsel %vm445, %v1078, 0
        %1093 = vmatprep.subr.mxu0 0.0
        %1094 = vmatpush1.msra.mxu0 0.0
        %1095 = vmatprep.subr.mxu0 0.0
        %1096 = vmatpush1.msra.mxu0 0.0
        %1097 = vmatprep.subr.mxu0 0.0
        %1098 = vmatpush1.msra.mxu0 0.0
        %1099 = vmatprep.subr.mxu0 0.0
        %1100 = vmatpush1.msra.mxu0 0.0
        %1101 = vmatprep.subr.mxu0 0.0
        %1102 = vmatpush1.msra.mxu0 0.0
        %1103 = vmatprep.subr.mxu0 0.0
        %1104 = vmatpush1.msra.mxu0 0.0
        %1105 = vmatprep.subr.mxu0 0.0
        %1106 = vmatpush1.msra.mxu0 0.0
        %1107 = vmatprep.subr.mxu0 0.0
        %1108 = vmatpush1.msra.mxu0 0.0
        %1109 = vmatprep.subr.mxu0 0.0
        %1110 = vmatpush1.msra.mxu0 0.0
        %1111 = vmatprep.subr.mxu0 0.0
        %1112 = vmatpush1.msra.mxu0 0.0
        %1113 = vmatprep.subr.mxu0 0.0
        %1114 = vmatpush1.msra.mxu0 0.0
        %1115 = vmatprep.subr.mxu0 0.0
        %1116 = vmatpush1.msra.mxu0 0.0
        %1117 = vmatprep.subr.mxu0 0.0
        %1118 = vmatpush1.msra.mxu0 %v1082
        %1119 = vmatprep.subr.mxu0 0.0
        %1120 = vmatpush1.msra.mxu0 %v1081
        %1121 = vmatprep.subr.mxu0 0.0
        %1122 = vmatpush1.msra.mxu0 %v1080
        %1123 = vmatprep.subr.mxu0 0.0
        %1124 = vmatpush1.msra.mxu0 %v1079
        %1125 = vmatprep.subr.mxu0 0.0
        %1126 = vmatpush2.msra.mxu0 0.0
        %1127 = vmatprep.subr.mxu0 0.0
        %1128 = vmatpush2.msra.mxu0 0.0
        %1129 = vmatprep.subr.mxu0 0.0
        %1130 = vmatpush2.msra.mxu0 0.0
        %1131 = vmatprep.subr.mxu0 0.0
        %1132 = vmatpush2.msra.mxu0 0.0
        %1133 = vmatprep.subr.mxu0 0.0
        %1134 = vmatpush2.msra.mxu0 0.0
        %1135 = vmatprep.subr.mxu0 0.0
        %1136 = vmatpush2.msra.mxu0 0.0
        %1137 = vmatprep.subr.mxu0 0.0
        %1138 = vmatpush2.msra.mxu0 0.0
        %1139 = vmatprep.subr.mxu0 0.0
        %1140 = vmatpush2.msra.mxu0 0.0
        %1141 = vmatprep.subr.mxu0 0.0
        %1142 = vmatpush2.msra.mxu0 0.0
        %1143 = vmatprep.subr.mxu0 0.0
        %1144 = vmatpush2.msra.mxu0 0.0
        %1145 = vmatprep.subr.mxu0 0.0
        %1146 = vmatpush2.msra.mxu0 0.0
        %1147 = vmatprep.subr.mxu0 0.0
        %1148 = vmatpush2.msra.mxu0 0.0
        %1149 = vmatprep.subr.mxu0 0.0
        %1150 = vmatpush2.msra.mxu0 0.0
        %1151 = vmatprep.subr.mxu0 0.0
        %1152 = vmatpush2.msra.mxu0 0.0
        %1153 = vmatprep.subr.mxu0 0.0
        %1154 = vmatpush2.msra.mxu0 0.0
        %1155 = vmatprep.subr.mxu0 0.0
        %1156 = vmatpush2.msra.mxu0 0.0
        %1157 = vmatprep.mubr.f32.mxu0 0.0
        %1158 = vmatmul.mubr.f32.gmra.mxu0 %v1088
        %v1159 = vpop.f32.mrf.mxu0
        %v1160 = vadd.f32 %v1086, %v1159
        %v1161 = vpop.f32.mrf.mxu0
        %1162 = vmatprep.mubr.f32.mxu0 0.0
        %1163 = vmatmul.mubr.f32.gmra.mxu0 %v1091
        %v1164 = vpop.f32.mrf.mxu0
        %v1165 = vadd.f32 %v1086, %v1164
        %v1166 = vpop.f32.mrf.mxu0
        %1167 = vdwg.mxu0
        %v1168 = vmax.f32 %v1160, 0.0
        %v1169 = vmax.f32 %v1165, 0.0
        %v1170 = vld [vmem:[%s418] sm:$0xff]
        %v1171 = vld [vmem:[%s418 + $0x8] sm:$0xff]
        %v1172 = vld [vmem:[%s418 + $0x10] sm:$0xff]
        %v1173 = vld [vmem:[%s418 + $0x18] sm:$0xff]
        %v1174 = vld [vmem:[%s418 + $0x20] sm:$0xff]
        %v1175 = vld [vmem:[%s418 + $0x28] sm:$0xff]
        %v1176 = vld [vmem:[%s418 + $0x30] sm:$0xff]
        %v1177 = vld [vmem:[%s418 + $0x38] sm:$0xff]
        %v1178 = vld [vmem:[%s418 + $0x40] sm:$0xff]
        %v1179 = vld [vmem:[%s418 + $0x48] sm:$0xff]
        %v1180 = vld [vmem:[%s418 + $0x50] sm:$0xff]
        %v1181 = vld [vmem:[%s418 + $0x58] sm:$0xff]
        %v1182 = vld [vmem:[%s418 + $0x60] sm:$0xff]
        %v1183 = vld [vmem:[%s418 + $0x68] sm:$0xff]
        %v1184 = vld [vmem:[%s418 + $0x70] sm:$0xff]
        %v1185 = vld [vmem:[%s418 + $0x78] sm:$0xff]
        %v1186 = vlaneseq
        %v1187 = vshrl.u32 %v1186, 7
        %v1188 = vsub.s32 3, %v1187
        %v1189 = vrot.slane %v444, %v1188
        %1190 = vmatprep.subr.mxu0 0.0
        %1191 = vmatpush1.msra.mxu0 %v1185
        %1192 = vmatprep.subr.mxu0 0.0
        %1193 = vmatpush1.msra.mxu0 %v1184
        %1194 = vmatprep.subr.mxu0 0.0
        %1195 = vmatpush1.msra.mxu0 %v1183
        %1196 = vmatprep.subr.mxu0 0.0
        %1197 = vmatpush1.msra.mxu0 %v1182
        %1198 = vmatprep.subr.mxu0 0.0
        %1199 = vmatpush1.msra.mxu0 %v1181
        %1200 = vmatprep.subr.mxu0 0.0
        %1201 = vmatpush1.msra.mxu0 %v1180
        %1202 = vmatprep.subr.mxu0 0.0
        %1203 = vmatpush1.msra.mxu0 %v1179
        %1204 = vmatprep.subr.mxu0 0.0
        %1205 = vmatpush1.msra.mxu0 %v1178
        %1206 = vmatprep.subr.mxu0 0.0
        %1207 = vmatpush1.msra.mxu0 %v1177
        %1208 = vmatprep.subr.mxu0 0.0
        %1209 = vmatpush1.msra.mxu0 %v1176
        %1210 = vmatprep.subr.mxu0 0.0
        %1211 = vmatpush1.msra.mxu0 %v1175
        %1212 = vmatprep.subr.mxu0 0.0
        %1213 = vmatpush1.msra.mxu0 %v1174
        %1214 = vmatprep.subr.mxu0 0.0
        %1215 = vmatpush1.msra.mxu0 %v1173
        %1216 = vmatprep.subr.mxu0 0.0
        %1217 = vmatpush1.msra.mxu0 %v1172
        %1218 = vmatprep.subr.mxu0 0.0
        %1219 = vmatpush1.msra.mxu0 %v1171
        %1220 = vmatprep.subr.mxu0 0.0
        %1221 = vmatpush1.msra.mxu0 %v1170
        %1222 = vmatprep.subr.mxu0 0.0
        %1223 = vmatpush2.msra.mxu0 0.0
        %1224 = vmatprep.subr.mxu0 0.0
        %1225 = vmatpush2.msra.mxu0 0.0
        %1226 = vmatprep.subr.mxu0 0.0
        %1227 = vmatpush2.msra.mxu0 0.0
        %1228 = vmatprep.subr.mxu0 0.0
        %1229 = vmatpush2.msra.mxu0 0.0
        %1230 = vmatprep.subr.mxu0 0.0
        %1231 = vmatpush2.msra.mxu0 0.0
        %1232 = vmatprep.subr.mxu0 0.0
        %1233 = vmatpush2.msra.mxu0 0.0
        %1234 = vmatprep.subr.mxu0 0.0
        %1235 = vmatpush2.msra.mxu0 0.0
        %1236 = vmatprep.subr.mxu0 0.0
        %1237 = vmatpush2.msra.mxu0 0.0
        %1238 = vmatprep.subr.mxu0 0.0
        %1239 = vmatpush2.msra.mxu0 0.0
        %1240 = vmatprep.subr.mxu0 0.0
        %1241 = vmatpush2.msra.mxu0 0.0
        %1242 = vmatprep.subr.mxu0 0.0
        %1243 = vmatpush2.msra.mxu0 0.0
        %1244 = vmatprep.subr.mxu0 0.0
        %1245 = vmatpush2.msra.mxu0 0.0
        %1246 = vmatprep.subr.mxu0 0.0
        %1247 = vmatpush2.msra.mxu0 0.0
        %1248 = vmatprep.subr.mxu0 0.0
        %1249 = vmatpush2.msra.mxu0 0.0
        %1250 = vmatprep.subr.mxu0 0.0
        %1251 = vmatpush2.msra.mxu0 0.0
        %1252 = vmatprep.subr.mxu0 0.0
        %1253 = vmatpush2.msra.mxu0 0.0
        %1254 = vmatprep.mubr.f32.mxu0 0.0
        %1255 = vmatmul.mubr.f32.gmra.mxu0 %v1168
        %v1256 = vpop.f32.mrf.mxu0
        %v1257 = vadd.f32 %v1189, %v1256
        %v1258 = vpop.f32.mrf.mxu0
        %1259 = vmatprep.mubr.f32.mxu0 0.0
        %1260 = vmatmul.mubr.f32.gmra.mxu0 %v1169
        %v1261 = vpop.f32.mrf.mxu0
        %v1262 = vadd.f32 %v1189, %v1261
        %v1263 = vpop.f32.mrf.mxu0
        %1264 = vdwg.mxu0
        %v1265 = vadd.f32 %v1051, %v1257
        %v1266 = vadd.f32 %v1052, %v1262
        %1267 = vst.msk [vmem:[#allocation2] sm:$0xff] %vm445, %v1265
        %1268 = vst.msk [vmem:[#allocation2 + $0x8] sm:$0xff] %vm445, %v1266
        %p1269 = scmp.eq.s32.totalorder %s22, 1
        // Predicated region
        $region65: #{transformer_forward.1} parent=59 // pred_check
          %p1270 = pneg %p1269
        $region66: #{transformer_forward.1} parent=59 // pred_check_branch
          %1272 = sbr.rel (%p1270) target = $region68
        $region67: #{transformer_forward.1} parent=59 // pred_region
          %v1273 = vsel %vm445, %v1265, 0.0
          %1274 = vadd.xlane.f32.xlu0 %v1273
          %v1275 = vpop.xlane.xlu0 %1274
          %v1276 = vsel %vm445, %v1266, 0.0
          %1277 = vadd.xlane.f32.xlu0 %v1276
          %v1278 = vpop.xlane.xlu0 %1277
          %v1279 = vmul.f32 %v1275, %v452
          %v1280 = vmul.f32 %v1278, %v452
          %v1281 = vsub.f32 %v1265, %v1279
          %v1282 = vsub.f32 %v1266, %v1280
          %v1283 = vmul.f32 %v1281, %v1281
          %v1284 = vmul.f32 %v1282, %v1282
          %v1285 = vsel %vm445, %v1283, 0.0
          %1286 = vadd.xlane.f32.xlu0 %v1285
          %v1287 = vpop.xlane.xlu0 %1286
          %v1288 = vsel %vm445, %v1284, 0.0
          %1289 = vadd.xlane.f32.xlu0 %v1288
          %v1290 = vpop.xlane.xlu0 %1289
          %v1291 = vmul.f32 %v1287, %v452
          %v1292 = vmul.f32 %v1290, %v452
          %v1293 = vadd.f32 %v1291, 1e-05
          %v1294 = vadd.f32 %v1292, 1e-05
          %v1295 = vrsqrt.pop %v1293
          %v1296 = vrsqrt.pop %v1294
          %v1297 = vmul.f32 %v1281, %v1295
          %v1298 = vmul.f32 %v1282, %v1296
          %v1299 = vld [vmem:[%s3] sm:$0xff]
          %v1300 = vld [vmem:[%s3 + $0x8] sm:$0xff]
          %v1301 = vld [vmem:[%s3 + $0x10] sm:$0xff]
          %v1302 = vld [vmem:[%s3 + $0x18] sm:$0xff]
          %v1303 = vld [vmem:[%s3 + $0x20] sm:$0xff]
          %v1304 = vld [vmem:[%s3 + $0x28] sm:$0xff]
          %v1305 = vld [vmem:[%s3 + $0x30] sm:$0xff]
          %v1306 = vld [vmem:[%s3 + $0x38] sm:$0xff]
          %v1307 = vld [vmem:[%s4] sm:$0x3]
          %v1309 = vlaneseq
          %v1310 = vshrl.u32 %v1309, 7
          %v1311 = vsub.s32 0, %v1310
          %v1312 = vrot.slane %v1307, %v1311
          %v1313 = vlaneseq
          %v1314 = vshrl.u32 %v1313, 7
          %v1315 = vsub.s32 1, %v1314
          %v1316 = vrot.slane %v1307, %v1315
          %v1320 = vsel %vm445, %v1297, 0
          %v1323 = vsel %vm445, %v1298, 0
          %1325 = vmatprep.subr.mxu0 0.0
          %1326 = vmatpush1.msra.mxu0 0.0
          %1327 = vmatprep.subr.mxu0 0.0
          %1328 = vmatpush1.msra.mxu0 0.0
          %1329 = vmatprep.subr.mxu0 0.0
          %1330 = vmatpush1.msra.mxu0 0.0
          %1331 = vmatprep.subr.mxu0 0.0
          %1332 = vmatpush1.msra.mxu0 0.0
          %1333 = vmatprep.subr.mxu0 0.0
          %1334 = vmatpush1.msra.mxu0 0.0
          %1335 = vmatprep.subr.mxu0 0.0
          %1336 = vmatpush1.msra.mxu0 0.0
          %1337 = vmatprep.subr.mxu0 0.0
          %1338 = vmatpush1.msra.mxu0 0.0
          %1339 = vmatprep.subr.mxu0 0.0
          %1340 = vmatpush1.msra.mxu0 0.0
          %1341 = vmatprep.subr.mxu0 0.0
          %1342 = vmatpush1.msra.mxu0 0.0
          %1343 = vmatprep.subr.mxu0 0.0
          %1344 = vmatpush1.msra.mxu0 0.0
          %1345 = vmatprep.subr.mxu0 0.0
          %1346 = vmatpush1.msra.mxu0 0.0
          %1347 = vmatprep.subr.mxu0 0.0
          %1348 = vmatpush1.msra.mxu0 0.0
          %1349 = vmatprep.subr.mxu0 %v1306
          %1350 = vmatpush1.msra.mxu0 %v1305
          %1351 = vmatprep.subr.mxu0 %v1304
          %1352 = vmatpush1.msra.mxu0 %v1303
          %1353 = vmatprep.subr.mxu0 %v1302
          %1354 = vmatpush1.msra.mxu0 %v1301
          %1355 = vmatprep.subr.mxu0 %v1300
          %1356 = vmatpush1.msra.mxu0 %v1299
          %1357 = vmatprep.subr.mxu0 0.0
          %1358 = vmatpush2.msra.mxu0 0.0
          %1359 = vmatprep.subr.mxu0 0.0
          %1360 = vmatpush2.msra.mxu0 0.0
          %1361 = vmatprep.subr.mxu0 0.0
          %1362 = vmatpush2.msra.mxu0 0.0
          %1363 = vmatprep.subr.mxu0 0.0
          %1364 = vmatpush2.msra.mxu0 0.0
          %1365 = vmatprep.subr.mxu0 0.0
          %1366 = vmatpush2.msra.mxu0 0.0
          %1367 = vmatprep.subr.mxu0 0.0
          %1368 = vmatpush2.msra.mxu0 0.0
          %1369 = vmatprep.subr.mxu0 0.0
          %1370 = vmatpush2.msra.mxu0 0.0
          %1371 = vmatprep.subr.mxu0 0.0
          %1372 = vmatpush2.msra.mxu0 0.0
          %1373 = vmatprep.subr.mxu0 0.0
          %1374 = vmatpush2.msra.mxu0 0.0
          %1375 = vmatprep.subr.mxu0 0.0
          %1376 = vmatpush2.msra.mxu0 0.0
          %1377 = vmatprep.subr.mxu0 0.0
          %1378 = vmatpush2.msra.mxu0 0.0
          %1379 = vmatprep.subr.mxu0 0.0
          %1380 = vmatpush2.msra.mxu0 0.0
          %1381 = vmatprep.subr.mxu0 0.0
          %1382 = vmatpush2.msra.mxu0 0.0
          %1383 = vmatprep.subr.mxu0 0.0
          %1384 = vmatpush2.msra.mxu0 0.0
          %1385 = vmatprep.subr.mxu0 0.0
          %1386 = vmatpush2.msra.mxu0 0.0
          %1387 = vmatprep.subr.mxu0 0.0
          %1388 = vmatpush2.msra.mxu0 0.0
          %1389 = vmatprep.mubr.f32.mxu0 0.0
          %1390 = vmatmul.mubr.f32.gmra.mxu0 %v1320
          %v1391 = vpop.f32.mrf.mxu0
          %v1392 = vadd.f32 %v1312, %v1391
          %v1393 = vpop.f32.mrf.mxu0
          %v1394 = vadd.f32 %v1316, %v1393
          %1395 = vmatprep.mubr.f32.mxu0 0.0
          %1396 = vmatmul.mubr.f32.gmra.mxu0 %v1323
          %v1397 = vpop.f32.mrf.mxu0
          %v1398 = vadd.f32 %v1312, %v1397
          %v1399 = vpop.f32.mrf.mxu0
          %v1400 = vadd.f32 %v1316, %v1399
          %1401 = vdwg.mxu0
          %1402 = vst [vmem:[#allocation3] sm:$0xff] %v1392
          %1403 = vst [vmem:[#allocation3 + $0x8] sm:$0xff] %v1394
          %1404 = vst [vmem:[#allocation3 + $0x10] sm:$0xff] %v1398
          %1405 = vst [vmem:[#allocation3 + $0x18] sm:$0xff] %v1400
        $region68: #{transformer_forward.1} parent=59 // pred_fallthru
          _
        // Predicated region
        $region69: #{transformer_forward.1} parent=59 // pred_check
          %p1406 = pneg %p270
        $region70: #{transformer_forward.1} parent=59 // pred_check_branch
          %1408 = sbr.rel (%p1406) target = $region72
        $region71: #{transformer_forward.1} parent=59 // pred_region
          %s1410 = ssub.s32 512, 512
          %1411 = vsyncadd [#allocation4], %s1410
          %s1412 = sshll.u32 [#allocation3], 4
          %s1413 = int_to_ptr.vmem [resolvable:$true] %s1412
          %1418 = dma.vmem_to_hbm [thread:$0]  %s1413, 512, %s10, [#allocation4], 256, 256, 16
        $region72: #{transformer_forward.1} parent=59 // pred_fallthru
          _
        // Predicated region
        $region73: #{transformer_forward.1} parent=59 // pred_check
          %p1419 = pneg %p270
        $region74: #{transformer_forward.1} parent=59 // pred_check_branch
          %1421 = sbr.rel (%p1419) target = $region76
        $region75: #{transformer_forward.1} parent=59 // pred_region
          %1422 = dma.done [#allocation4], 512
        $region76: #{transformer_forward.1} parent=59 // pred_fallthru
          _
      $region60: #{transformer_forward.1} parent=5 // pred_fallthru
        _
      %p1423 = scmp.le.s32.totalorder 2, %s17
      // Predicated region
      $region77: #{transformer_forward.1} parent=5 // pred_check
        %p1424 = pneg %p1423
      $region78: #{transformer_forward.1} parent=5 // pred_check_branch
        %1426 = sbr.rel (%p1424) target = $region80
      $region79: #{transformer_forward.1} parent=5 // pred_region
        %s1427 = ssub.s32 %s17, 2
      $region80: #{transformer_forward.1} parent=5 // pred_fallthru
        _
    $region6: #{transformer_forward.1} parent=1 // loop_footer
      %s21 = sadd.s32 1, %s17
    $region7: #{transformer_forward.1} parent=1 // loop_footer_branch
      %16 = sbr.rel target = $region3
    $region8: #{transformer_forward.1} parent=1 // loop_exit
      _
    %1428 = vsyncpa [#allocation4], 1
    %s1429 = scalar_lea.sflag [#allocation4], 1
    %1430 = vsyncpa %s1429, 1

</llo_original>
